<compile_context>
chip_gen: v5e
topology: v5e:2x2
jax: 0.10.0
libtpu: 0.0.40
codegen_flags: <defaults>
</compile_context>

<pallas_src>
import jax
import jax.numpy as jnp
from jax.experimental import pallas as pl
from jax.experimental.pallas import tpu as pltpu


EPS = 1e-5
LANE = 128


# ----------------------------------------------------------------------------
# BatchNorm helpers
# ----------------------------------------------------------------------------
def _bn_train(x, gamma=None, beta=None):
    """BatchNorm1d, training mode, one-pass batch stats, biased variance."""
    inv_n = 1.0 / x.shape[0]
    mean = jnp.sum(x, axis=0, keepdims=True) * inv_n
    ex2 = jnp.sum(x * x, axis=0, keepdims=True) * inv_n
    var = jnp.maximum(ex2 - mean * mean, 0.0)    # guard tiny negative from cancellation
    y = (x - mean) * jax.lax.rsqrt(var + EPS)
    if gamma is not None:
        y = y * gamma + beta
    return y


def _bn_ref(x, gamma=None, beta=None):
    """Two-pass BN (module-faithful reference path)."""
    mean = jnp.mean(x, axis=0, keepdims=True)
    var = jnp.mean(jnp.square(x - mean), axis=0, keepdims=True)
    y = (x - mean) * jax.lax.rsqrt(var + EPS)
    if gamma is not None:
        y = y * gamma + beta
    return y


# ----------------------------------------------------------------------------
# Pallas kernel
# ----------------------------------------------------------------------------
def phead_kernel(
    x_ref, w0_ref,                    # streamed over K: (B, tk) bf16, (tk, Dp) bf16
    w1_ref, g1_ref, be1_ref,          # proj L1 (Dp,Hp) bf16, BN1 gamma/beta (1,Hp) f32
    w2_ref, g2_ref, be2_ref,          # proj L2 (Hp,Hp) bf16, BN2 gamma/beta (1,Hp) f32
    w3_ref,                           # proj L3 (Hp,Pp) bf16  (bias cancelled by BN3)
    w4_ref, g4_ref, be4_ref,          # pfc  L1 (Pp,Prp) bf16, BN gamma/beta (1,Prp) f32
    w5_ref, b5_ref,                   # pfc  L2 (Prp,Pp) bf16, bias (1,Pp) f32
    emb_ref, py_ref,                  # outputs (B, Pp) f32
    acc_ref,                          # scratch (B, Dp) f32: backbone accumulator
):
    f32 = jnp.float32
    bf16 = jnp.bfloat16
    k = pl.program_id(0)

    @pl.when(k == 0)
    def _init():
        acc_ref[...] = jnp.zeros_like(acc_ref)

    # Backbone partial product for this K tile (MXU, f32 accumulation).
    acc_ref[...] += jnp.dot(x_ref[...], w0_ref[...], preferred_element_type=f32)

    @pl.when(k == pl.num_programs(0) - 1)
    def _finalize():
        feat = acc_ref[...]                                           # (B, Dp) f32

        # projection_head
        h1 = jnp.dot(feat.astype(bf16), w1_ref[...], preferred_element_type=f32)
        h1 = jnp.maximum(_bn_train(h1, g1_ref[...], be1_ref[...]), 0.0)

        h2 = jnp.dot(h1.astype(bf16), w2_ref[...], preferred_element_type=f32)
        h2 = jnp.maximum(_bn_train(h2, g2_ref[...], be2_ref[...]), 0.0)

        e = jnp.dot(h2.astype(bf16), w3_ref[...], preferred_element_type=f32)
        emb = _bn_train(e)                                            # BN, affine=False

        # pfc
        p1 = jnp.dot(emb.astype(bf16), w4_ref[...], preferred_element_type=f32)
        p1 = jnp.maximum(_bn_train(p1, g4_ref[...], be4_ref[...]), 0.0)

        py = jnp.dot(p1.astype(bf16), w5_ref[...], preferred_element_type=f32)
        py = py + b5_ref[...]

        emb_ref[...] = emb.astype(emb_ref.dtype)
        py_ref[...] = py.astype(py_ref.dtype)


# ----------------------------------------------------------------------------
# Wrapper: padding, bf16 casting, grid / BlockSpec plumbing
# ----------------------------------------------------------------------------
def _rup(n, m):
    return ((n + m - 1) // m) * m


def _pad2d(a, rows, cols, fill=0.0):
    r, c = a.shape
    if r == rows and c == cols:
        return a
    return jnp.pad(a, ((0, rows - r), (0, cols - c)), constant_values=fill)


def phead_with_pseudo(x_nchw, params, *, k_tile=512):
    """Flatten NCHW input, pad to lane-aligned shapes, run the fused kernel."""
    B = x_nchw.shape[0]
    x = x_nchw.reshape(B, -1).astype(jnp.float32)
    F = x.shape[1]

    D = params["w1"].shape[0]    # dim_in
    Hh = params["w1"].shape[1]   # hidden_mlp
    Pr = params["w4"].shape[1]   # pred_dim
    P = params["w3"].shape[1]    # pseudo

    Dp, Hp, Prp, Pp = (_rup(v, LANE) for v in (D, Hh, Pr, P))
    TK = min(k_tile, _rup(F, LANE))
    Fp = _rup(F, TK)
    nk = Fp // TK

    bf16 = jnp.bfloat16
    # bf16 matmul operands (halves DMA bytes); BN params / biases stay f32.
    xp   = _pad2d(x, B, Fp).astype(bf16)
    w0p  = _pad2d(params["w0"], Fp, Dp).astype(bf16)
    w1p  = _pad2d(params["w1"], Dp, Hp).astype(bf16)
    g1p  = _pad2d(params["g1"], 1, Hp, 1.0)
    be1p = _pad2d(params["be1"], 1, Hp)
    w2p  = _pad2d(params["w2"], Hp, Hp).astype(bf16)
    g2p  = _pad2d(params["g2"], 1, Hp, 1.0)
    be2p = _pad2d(params["be2"], 1, Hp)
    w3p  = _pad2d(params["w3"], Hp, Pp).astype(bf16)
    w4p  = _pad2d(params["w4"], Pp, Prp).astype(bf16)
    g4p  = _pad2d(params["g4"], 1, Prp, 1.0)
    be4p = _pad2d(params["be4"], 1, Prp)
    w5p  = _pad2d(params["w5"], Prp, Pp).astype(bf16)
    b5p  = _pad2d(params["b5"], 1, Pp)

    ordered = [xp, w0p, w1p, g1p, be1p, w2p, g2p, be2p, w3p,
               w4p, g4p, be4p, w5p, b5p]

    # x / w0 stream K tiles; everything else is grid-invariant (constant block
    # index -> DMA'd once, stays VMEM-resident across the reduction grid).
    in_specs = [
        pl.BlockSpec((B, TK), lambda k: (0, k)),
        pl.BlockSpec((TK, Dp), lambda k: (k, 0)),
    ] + [pl.BlockSpec(a.shape, lambda k: (0, 0)) for a in ordered[2:]]

    out_shapes = (
        jax.ShapeDtypeStruct((B, Pp), jnp.float32),   # emb (padded)
        jax.ShapeDtypeStruct((B, Pp), jnp.float32),   # py  (padded)
    )
    out_specs = (
        pl.BlockSpec((B, Pp), lambda k: (0, 0)),
        pl.BlockSpec((B, Pp), lambda k: (0, 0)),
    )

    emb_p, py_p = pl.pallas_call(
        phead_kernel,
        out_shape=out_shapes,
        grid=(nk,),
        in_specs=in_specs,
        out_specs=out_specs,
        scratch_shapes=[pltpu.VMEM((B, Dp), jnp.float32)],
        compiler_params=pltpu.CompilerParams(
            dimension_semantics=("arbitrary",),       # K is a reduction axis
        ),
    )(*ordered)

    return emb_p[:, :P], py_p[:, :P]


# ----------------------------------------------------------------------------
# Parameters (deterministic synthetic init; shapes follow the nn.Module)
# ----------------------------------------------------------------------------
def make_params(key, feat_in, dim_in, hidden_mlp, pred_dim, pseudo):
    ks = jax.random.split(key, 8)

    def lin(k, fan_in, fan_out):
        return (jax.random.normal(k, (fan_in, fan_out), jnp.float32)
                / jnp.sqrt(jnp.float32(fan_in)))

    p = {}
    # placeholder backbone `net`: Linear(feat_in -> dim_in) with bias
    p["w0"] = lin(ks[0], feat_in, dim_in)
    p["b0"] = 0.01 * jnp.ones((1, dim_in), jnp.float32)
    # projection_head
    p["w1"] = lin(ks[1], dim_in, hidden_mlp)              # Linear no bias
    p["g1"] = jnp.ones((1, hidden_mlp), jnp.float32)
    p["be1"] = jnp.zeros((1, hidden_mlp), jnp.float32)
    p["w2"] = lin(ks[2], hidden_mlp, hidden_mlp)          # Linear no bias
    p["g2"] = jnp.ones((1, hidden_mlp), jnp.float32)
    p["be2"] = jnp.zeros((1, hidden_mlp), jnp.float32)
    p["w3"] = lin(ks[3], hidden_mlp, pseudo)              # Linear with bias
    p["b3"] = 0.01 * jnp.ones((1, pseudo), jnp.float32)
    # pfc
    p["w4"] = lin(ks[4], pseudo, pred_dim)                # Linear no bias
    p["g4"] = jnp.ones((1, pred_dim), jnp.float32)
    p["be4"] = jnp.zeros((1, pred_dim), jnp.float32)
    p["w5"] = lin(ks[5], pred_dim, pseudo)                # Linear with bias
    p["b5"] = 0.01 * jnp.ones((1, pseudo), jnp.float32)
    return p


# ----------------------------------------------------------------------------
# Pure-JAX references
# ----------------------------------------------------------------------------
def reference_f32(x_nchw, p):
    """Module-faithful full-f32 forward (includes b0/b3)."""
    x = x_nchw.reshape(x_nchw.shape[0], -1).astype(jnp.float32)
    feat = x @ p["w0"] + p["b0"]
    h1 = jnp.maximum(_bn_ref(feat @ p["w1"], p["g1"], p["be1"]), 0.0)
    h2 = jnp.maximum(_bn_ref(h1 @ p["w2"], p["g2"], p["be2"]), 0.0)
    emb = _bn_ref(h2 @ p["w3"] + p["b3"])
    p1 = jnp.maximum(_bn_ref(emb @ p["w4"], p["g4"], p["be4"]), 0.0)
    py = p1 @ p["w5"] + p["b5"]
    return emb, py


def reference_kernel_precision(x_nchw, p):
    """Mirror of the kernel's numerics: bf16 matmul operands, f32 accumulate /
    BN, one-pass BN stats, b0/b3 omitted (exactly cancelled by the BNs)."""
    bf16, f32 = jnp.bfloat16, jnp.float32
    mm = lambda a, w: jnp.dot(a.astype(bf16), w.astype(bf16),
                              preferred_element_type=f32)
    x = x_nchw.reshape(x_nchw.shape[0], -1).astype(f32)
    feat = mm(x, p["w0"])
    h1 = jnp.maximum(_bn_train(mm(feat, p["w1"]), p["g1"], p["be1"]), 0.0)
    h2 = jnp.maximum(_bn_train(mm(h1, p["w2"]), p["g2"], p["be2"]), 0.0)
    emb = _bn_train(mm(h2, p["w3"]))
    p1 = jnp.maximum(_bn_train(mm(emb, p["w4"]), p["g4"], p["be4"]), 0.0)
    py = mm(p1, p["w5"]) + p["b5"]
    return emb, py


# ----------------------------------------------------------------------------
if __name__ == "__main__":
    # Small shapes consistent with the module's structure; feature dims are
    # deliberately NOT multiples of 128 to exercise the wrapper-side padding.
    B, C, Himg, Wimg = 8, 4, 16, 16                   # NCHW input batch
    dim_in, hidden_mlp, pred_dim, pseudo = 192, 256, 96, 200
    feat_in = C * Himg * Wimg                         # 1024 -> 2 K-tiles of 512

    key = jax.random.PRNGKey(0)
    kx, kp = jax.random.split(key)
    x = jax.random.normal(kx, (B, C, Himg, Wimg), jnp.float32)
    params = make_params(kp, feat_in, dim_in, hidden_mlp, pred_dim, pseudo)

    emb, py = phead_with_pseudo(x, params)
    jax.block_until_ready((emb, py))
    assert emb.shape == (B, pseudo) and py.shape == (B, pseudo)

    # Tight check vs. a pure-JAX mirror of the kernel's own numerics.
    emb_m, py_m = reference_kernel_precision(x, params)
    assert jnp.allclose(emb, emb_m, atol=5e-3, rtol=5e-3)
    assert jnp.allclose(py, py_m, atol=5e-3, rtol=5e-3)

    # Loose semantic check vs. the full-f32 module-faithful reference
    # (deviation bounded by the bf16 matmul-operand rounding).
    emb_f, py_f = reference_f32(x, params)
    assert jnp.allclose(emb, emb_f, atol=0.2, rtol=0.2)
    assert jnp.allclose(py, py_f, atol=0.2, rtol=0.2)

    print("KERNEL_OK")
</pallas_src>

<mosaic_0001>
module attributes {stable_mosaic.version = 11 : i64} {
  func.func @phead_kernel(%arg0: i32, %arg1: memref<8x512xbf16, #tpu.memory_space<vmem>>, %arg2: memref<512x256xbf16, #tpu.memory_space<vmem>>, %arg3: memref<256x256xbf16, #tpu.memory_space<vmem>>, %arg4: memref<1x256xf32, #tpu.memory_space<vmem>>, %arg5: memref<1x256xf32, #tpu.memory_space<vmem>>, %arg6: memref<256x256xbf16, #tpu.memory_space<vmem>>, %arg7: memref<1x256xf32, #tpu.memory_space<vmem>>, %arg8: memref<1x256xf32, #tpu.memory_space<vmem>>, %arg9: memref<256x256xbf16, #tpu.memory_space<vmem>>, %arg10: memref<256x128xbf16, #tpu.memory_space<vmem>>, %arg11: memref<1x128xf32, #tpu.memory_space<vmem>>, %arg12: memref<1x128xf32, #tpu.memory_space<vmem>>, %arg13: memref<128x256xbf16, #tpu.memory_space<vmem>>, %arg14: memref<1x256xf32, #tpu.memory_space<vmem>>, %arg15: memref<8x256xf32, #tpu.memory_space<vmem>>, %arg16: memref<8x256xf32, #tpu.memory_space<vmem>>, %arg17: memref<8x256xf32, #tpu.memory_space<vmem>>) attributes {dimension_semantics = [#tpu.dimension_semantics<arbitrary>], iteration_bounds = array<i64: 2>, scalar_prefetch = 0 : i64, scratch_operands = 1 : i64, tpu.core_type = #tpu.core_type<tc>, window_params = [{transform_indices = @transform_0, window_bounds = array<i64: 8, 512>}, {transform_indices = @transform_1, window_bounds = array<i64: 512, 256>}, {pipeline_mode = #tpu.pipeline_mode<synchronous>, transform_indices = @transform_2, window_bounds = array<i64: 256, 256>}, {pipeline_mode = #tpu.pipeline_mode<synchronous>, transform_indices = @transform_3, window_bounds = array<i64: 1, 256>}, {pipeline_mode = #tpu.pipeline_mode<synchronous>, transform_indices = @transform_4, window_bounds = array<i64: 1, 256>}, {pipeline_mode = #tpu.pipeline_mode<synchronous>, transform_indices = @transform_5, window_bounds = array<i64: 256, 256>}, {pipeline_mode = #tpu.pipeline_mode<synchronous>, transform_indices = @transform_6, window_bounds = array<i64: 1, 256>}, {pipeline_mode = #tpu.pipeline_mode<synchronous>, transform_indices = @transform_7, window_bounds = array<i64: 1, 256>}, {pipeline_mode = #tpu.pipeline_mode<synchronous>, transform_indices = @transform_8, window_bounds = array<i64: 256, 256>}, {pipeline_mode = #tpu.pipeline_mode<synchronous>, transform_indices = @transform_9, window_bounds = array<i64: 256, 128>}, {pipeline_mode = #tpu.pipeline_mode<synchronous>, transform_indices = @transform_10, window_bounds = array<i64: 1, 128>}, {pipeline_mode = #tpu.pipeline_mode<synchronous>, transform_indices = @transform_11, window_bounds = array<i64: 1, 128>}, {pipeline_mode = #tpu.pipeline_mode<synchronous>, transform_indices = @transform_12, window_bounds = array<i64: 128, 256>}, {pipeline_mode = #tpu.pipeline_mode<synchronous>, transform_indices = @transform_13, window_bounds = array<i64: 1, 256>}, {pipeline_mode = #tpu.pipeline_mode<synchronous>, transform_indices = @transform_14, window_bounds = array<i64: 8, 256>}, {pipeline_mode = #tpu.pipeline_mode<synchronous>, transform_indices = @transform_15, window_bounds = array<i64: 8, 256>}]} {
    %c0_i32 = arith.constant 0 : i32
    %0 = arith.cmpi eq, %arg0, %c0_i32 : i32
    %1 = arith.extui %0 : i1 to i32
    %c0_i32_0 = arith.constant 0 : i32
    %2 = arith.cmpi ne, %1, %c0_i32_0 : i32
    scf.if %2 {
      %cst_9 = arith.constant 0.000000e+00 : f32
      %12 = vector.broadcast %cst_9 : f32 to vector<8x256xf32>
      %c0_10 = arith.constant 0 : index
      %c0_11 = arith.constant 0 : index
      %13 = vector.load %arg17[%c0_10, %c0_11] : memref<8x256xf32, #tpu.memory_space<vmem>>, vector<8x256xf32>
      tpu.vector_store %arg17[%c0_10, %c0_11], %12 {strides = array<i32>} : memref<8x256xf32, #tpu.memory_space<vmem>>, vector<8x256xf32>,
    } else {
    }
    %c0 = arith.constant 0 : index
    %c0_1 = arith.constant 0 : index
    %3 = vector.load %arg17[%c0, %c0_1] : memref<8x256xf32, #tpu.memory_space<vmem>>, vector<8x256xf32>
    %c0_2 = arith.constant 0 : index
    %c0_3 = arith.constant 0 : index
    %4 = vector.load %arg1[%c0_2, %c0_3] : memref<8x512xbf16, #tpu.memory_space<vmem>>, vector<8x512xbf16>
    %c0_4 = arith.constant 0 : index
    %c0_5 = arith.constant 0 : index
    %5 = vector.load %arg2[%c0_4, %c0_5] : memref<512x256xbf16, #tpu.memory_space<vmem>>, vector<512x256xbf16>
    %cst = arith.constant dense<0.000000e+00> : vector<8x256xf32>
    %6 = tpu.matmul %4, %5, %cst {dimension_numbers = #tpu.dot_dimension_numbers<[1], [0], [0], [1], [0, 0, 1, 1], [], []>} : vector<8x512xbf16>, vector<512x256xbf16>, vector<8x256xf32> -> vector<8x256xf32>
    %7 = arith.addf %3, %6 : vector<8x256xf32>
    %c0_6 = arith.constant 0 : index
    %c0_7 = arith.constant 0 : index
    %8 = vector.load %arg17[%c0_6, %c0_7] : memref<8x256xf32, #tpu.memory_space<vmem>>, vector<8x256xf32>
    tpu.vector_store %arg17[%c0_6, %c0_7], %7 {strides = array<i32>} : memref<8x256xf32, #tpu.memory_space<vmem>>, vector<8x256xf32>,
    %c1_i32 = arith.constant 1 : i32
    %9 = arith.cmpi eq, %arg0, %c1_i32 : i32
    %10 = arith.extui %9 : i1 to i32
    %c0_i32_8 = arith.constant 0 : i32
    %11 = arith.cmpi ne, %10, %c0_i32_8 : i32
    scf.if %11 {
      %c0_9 = arith.constant 0 : index
      %c0_10 = arith.constant 0 : index
      %12 = vector.load %arg17[%c0_9, %c0_10] : memref<8x256xf32, #tpu.memory_space<vmem>>, vector<8x256xf32>
      %13 = arith.truncf %12 : vector<8x256xf32> to vector<8x256xbf16>
      %c0_11 = arith.constant 0 : index
      %c0_12 = arith.constant 0 : index
      %14 = vector.load %arg3[%c0_11, %c0_12] : memref<256x256xbf16, #tpu.memory_space<vmem>>, vector<256x256xbf16>
      %cst_13 = arith.constant dense<0.000000e+00> : vector<8x256xf32>
      %15 = tpu.matmul %13, %14, %cst_13 {dimension_numbers = #tpu.dot_dimension_numbers<[1], [0], [0], [1], [0, 0, 1, 1], [], []>} : vector<8x256xbf16>, vector<256x256xbf16>, vector<8x256xf32> -> vector<8x256xf32>
      %c0_14 = arith.constant 0 : index
      %c0_15 = arith.constant 0 : index
      %16 = vector.load %arg4[%c0_14, %c0_15] : memref<1x256xf32, #tpu.memory_space<vmem>>, vector<1x256xf32>
      %c0_16 = arith.constant 0 : index
      %c0_17 = arith.constant 0 : index
      %17 = vector.load %arg5[%c0_16, %c0_17] : memref<1x256xf32, #tpu.memory_space<vmem>>, vector<1x256xf32>
      %cst_18 = arith.constant dense<0.000000e+00> : vector<256xf32>
      %18 = vector.multi_reduction <add>, %15, %cst_18 [0] : vector<8x256xf32> to vector<256xf32>
      %19 = vector.shape_cast %18 : vector<256xf32> to vector<1x256xf32>
      %cst_19 = arith.constant 1.250000e-01 : f32
      %20 = vector.broadcast %cst_19 : f32 to vector<1x256xf32>
      %21 = arith.mulf %19, %20 : vector<1x256xf32>
      %22 = arith.mulf %15, %15 : vector<8x256xf32>
      %cst_20 = arith.constant dense<0.000000e+00> : vector<256xf32>
      %23 = vector.multi_reduction <add>, %22, %cst_20 [0] : vector<8x256xf32> to vector<256xf32>
      %24 = vector.shape_cast %23 : vector<256xf32> to vector<1x256xf32>
      %cst_21 = arith.constant 1.250000e-01 : f32
      %25 = vector.broadcast %cst_21 : f32 to vector<1x256xf32>
      %26 = arith.mulf %24, %25 : vector<1x256xf32>
      %27 = arith.mulf %21, %21 : vector<1x256xf32>
      %28 = arith.subf %26, %27 : vector<1x256xf32>
      %cst_22 = arith.constant 0.000000e+00 : f32
      %29 = vector.broadcast %cst_22 : f32 to vector<1x256xf32>
      %30 = arith.maximumf %28, %29 : vector<1x256xf32>
      %31 = vector.broadcast %21 : vector<1x256xf32> to vector<8x256xf32>
      %32 = arith.subf %15, %31 : vector<8x256xf32>
      %cst_23 = arith.constant 9.99999974E-6 : f32
      %33 = vector.broadcast %cst_23 : f32 to vector<1x256xf32>
      %34 = arith.addf %30, %33 : vector<1x256xf32>
      %35 = math.rsqrt %34 : vector<1x256xf32>
      %36 = vector.broadcast %35 : vector<1x256xf32> to vector<8x256xf32>
      %37 = arith.mulf %32, %36 : vector<8x256xf32>
      %38 = vector.broadcast %16 : vector<1x256xf32> to vector<8x256xf32>
      %39 = arith.mulf %37, %38 : vector<8x256xf32>
      %40 = vector.broadcast %17 : vector<1x256xf32> to vector<8x256xf32>
      %41 = arith.addf %39, %40 : vector<8x256xf32>
      %cst_24 = arith.constant 0.000000e+00 : f32
      %42 = vector.broadcast %cst_24 : f32 to vector<8x256xf32>
      %43 = arith.maximumf %41, %42 : vector<8x256xf32>
      %44 = arith.truncf %43 : vector<8x256xf32> to vector<8x256xbf16>
      %c0_25 = arith.constant 0 : index
      %c0_26 = arith.constant 0 : index
      %45 = vector.load %arg6[%c0_25, %c0_26] : memref<256x256xbf16, #tpu.memory_space<vmem>>, vector<256x256xbf16>
      %cst_27 = arith.constant dense<0.000000e+00> : vector<8x256xf32>
      %46 = tpu.matmul %44, %45, %cst_27 {dimension_numbers = #tpu.dot_dimension_numbers<[1], [0], [0], [1], [0, 0, 1, 1], [], []>} : vector<8x256xbf16>, vector<256x256xbf16>, vector<8x256xf32> -> vector<8x256xf32>
      %c0_28 = arith.constant 0 : index
      %c0_29 = arith.constant 0 : index
      %47 = vector.load %arg7[%c0_28, %c0_29] : memref<1x256xf32, #tpu.memory_space<vmem>>, vector<1x256xf32>
      %c0_30 = arith.constant 0 : index
      %c0_31 = arith.constant 0 : index
      %48 = vector.load %arg8[%c0_30, %c0_31] : memref<1x256xf32, #tpu.memory_space<vmem>>, vector<1x256xf32>
      %cst_32 = arith.constant dense<0.000000e+00> : vector<256xf32>
      %49 = vector.multi_reduction <add>, %46, %cst_32 [0] : vector<8x256xf32> to vector<256xf32>
      %50 = vector.shape_cast %49 : vector<256xf32> to vector<1x256xf32>
      %cst_33 = arith.constant 1.250000e-01 : f32
      %51 = vector.broadcast %cst_33 : f32 to vector<1x256xf32>
      %52 = arith.mulf %50, %51 : vector<1x256xf32>
      %53 = arith.mulf %46, %46 : vector<8x256xf32>
      %cst_34 = arith.constant dense<0.000000e+00> : vector<256xf32>
      %54 = vector.multi_reduction <add>, %53, %cst_34 [0] : vector<8x256xf32> to vector<256xf32>
      %55 = vector.shape_cast %54 : vector<256xf32> to vector<1x256xf32>
      %cst_35 = arith.constant 1.250000e-01 : f32
      %56 = vector.broadcast %cst_35 : f32 to vector<1x256xf32>
      %57 = arith.mulf %55, %56 : vector<1x256xf32>
      %58 = arith.mulf %52, %52 : vector<1x256xf32>
      %59 = arith.subf %57, %58 : vector<1x256xf32>
      %cst_36 = arith.constant 0.000000e+00 : f32
      %60 = vector.broadcast %cst_36 : f32 to vector<1x256xf32>
      %61 = arith.maximumf %59, %60 : vector<1x256xf32>
      %62 = vector.broadcast %52 : vector<1x256xf32> to vector<8x256xf32>
      %63 = arith.subf %46, %62 : vector<8x256xf32>
      %cst_37 = arith.constant 9.99999974E-6 : f32
      %64 = vector.broadcast %cst_37 : f32 to vector<1x256xf32>
      %65 = arith.addf %61, %64 : vector<1x256xf32>
      %66 = math.rsqrt %65 : vector<1x256xf32>
      %67 = vector.broadcast %66 : vector<1x256xf32> to vector<8x256xf32>
      %68 = arith.mulf %63, %67 : vector<8x256xf32>
      %69 = vector.broadcast %47 : vector<1x256xf32> to vector<8x256xf32>
      %70 = arith.mulf %68, %69 : vector<8x256xf32>
      %71 = vector.broadcast %48 : vector<1x256xf32> to vector<8x256xf32>
      %72 = arith.addf %70, %71 : vector<8x256xf32>
      %cst_38 = arith.constant 0.000000e+00 : f32
      %73 = vector.broadcast %cst_38 : f32 to vector<8x256xf32>
      %74 = arith.maximumf %72, %73 : vector<8x256xf32>
      %75 = arith.truncf %74 : vector<8x256xf32> to vector<8x256xbf16>
      %c0_39 = arith.constant 0 : index
      %c0_40 = arith.constant 0 : index
      %76 = vector.load %arg9[%c0_39, %c0_40] : memref<256x256xbf16, #tpu.memory_space<vmem>>, vector<256x256xbf16>
      %cst_41 = arith.constant dense<0.000000e+00> : vector<8x256xf32>
      %77 = tpu.matmul %75, %76, %cst_41 {dimension_numbers = #tpu.dot_dimension_numbers<[1], [0], [0], [1], [0, 0, 1, 1], [], []>} : vector<8x256xbf16>, vector<256x256xbf16>, vector<8x256xf32> -> vector<8x256xf32>
      %cst_42 = arith.constant dense<0.000000e+00> : vector<256xf32>
      %78 = vector.multi_reduction <add>, %77, %cst_42 [0] : vector<8x256xf32> to vector<256xf32>
      %79 = vector.shape_cast %78 : vector<256xf32> to vector<1x256xf32>
      %cst_43 = arith.constant 1.250000e-01 : f32
      %80 = vector.broadcast %cst_43 : f32 to vector<1x256xf32>
      %81 = arith.mulf %79, %80 : vector<1x256xf32>
      %82 = arith.mulf %77, %77 : vector<8x256xf32>
      %cst_44 = arith.constant dense<0.000000e+00> : vector<256xf32>
      %83 = vector.multi_reduction <add>, %82, %cst_44 [0] : vector<8x256xf32> to vector<256xf32>
      %84 = vector.shape_cast %83 : vector<256xf32> to vector<1x256xf32>
      %cst_45 = arith.constant 1.250000e-01 : f32
      %85 = vector.broadcast %cst_45 : f32 to vector<1x256xf32>
      %86 = arith.mulf %84, %85 : vector<1x256xf32>
      %87 = arith.mulf %81, %81 : vector<1x256xf32>
      %88 = arith.subf %86, %87 : vector<1x256xf32>
      %cst_46 = arith.constant 0.000000e+00 : f32
      %89 = vector.broadcast %cst_46 : f32 to vector<1x256xf32>
      %90 = arith.maximumf %88, %89 : vector<1x256xf32>
      %91 = vector.broadcast %81 : vector<1x256xf32> to vector<8x256xf32>
      %92 = arith.subf %77, %91 : vector<8x256xf32>
      %cst_47 = arith.constant 9.99999974E-6 : f32
      %93 = vector.broadcast %cst_47 : f32 to vector<1x256xf32>
      %94 = arith.addf %90, %93 : vector<1x256xf32>
      %95 = math.rsqrt %94 : vector<1x256xf32>
      %96 = vector.broadcast %95 : vector<1x256xf32> to vector<8x256xf32>
      %97 = arith.mulf %92, %96 : vector<8x256xf32>
      %98 = arith.truncf %97 : vector<8x256xf32> to vector<8x256xbf16>
      %c0_48 = arith.constant 0 : index
      %c0_49 = arith.constant 0 : index
      %99 = vector.load %arg10[%c0_48, %c0_49] : memref<256x128xbf16, #tpu.memory_space<vmem>>, vector<256x128xbf16>
      %cst_50 = arith.constant dense<0.000000e+00> : vector<8x128xf32>
      %100 = tpu.matmul %98, %99, %cst_50 {dimension_numbers = #tpu.dot_dimension_numbers<[1], [0], [0], [1], [0, 0, 1, 1], [], []>} : vector<8x256xbf16>, vector<256x128xbf16>, vector<8x128xf32> -> vector<8x128xf32>
      %c0_51 = arith.constant 0 : index
      %c0_52 = arith.constant 0 : index
      %101 = vector.load %arg11[%c0_51, %c0_52] : memref<1x128xf32, #tpu.memory_space<vmem>>, vector<1x128xf32>
      %c0_53 = arith.constant 0 : index
      %c0_54 = arith.constant 0 : index
      %102 = vector.load %arg12[%c0_53, %c0_54] : memref<1x128xf32, #tpu.memory_space<vmem>>, vector<1x128xf32>
      %cst_55 = arith.constant dense<0.000000e+00> : vector<128xf32>
      %103 = vector.multi_reduction <add>, %100, %cst_55 [0] : vector<8x128xf32> to vector<128xf32>
      %104 = vector.shape_cast %103 : vector<128xf32> to vector<1x128xf32>
      %cst_56 = arith.constant 1.250000e-01 : f32
      %105 = vector.broadcast %cst_56 : f32 to vector<1x128xf32>
      %106 = arith.mulf %104, %105 : vector<1x128xf32>
      %107 = arith.mulf %100, %100 : vector<8x128xf32>
      %cst_57 = arith.constant dense<0.000000e+00> : vector<128xf32>
      %108 = vector.multi_reduction <add>, %107, %cst_57 [0] : vector<8x128xf32> to vector<128xf32>
      %109 = vector.shape_cast %108 : vector<128xf32> to vector<1x128xf32>
      %cst_58 = arith.constant 1.250000e-01 : f32
      %110 = vector.broadcast %cst_58 : f32 to vector<1x128xf32>
      %111 = arith.mulf %109, %110 : vector<1x128xf32>
      %112 = arith.mulf %106, %106 : vector<1x128xf32>
      %113 = arith.subf %111, %112 : vector<1x128xf32>
      %cst_59 = arith.constant 0.000000e+00 : f32
      %114 = vector.broadcast %cst_59 : f32 to vector<1x128xf32>
      %115 = arith.maximumf %113, %114 : vector<1x128xf32>
      %116 = vector.broadcast %106 : vector<1x128xf32> to vector<8x128xf32>
      %117 = arith.subf %100, %116 : vector<8x128xf32>
      %cst_60 = arith.constant 9.99999974E-6 : f32
      %118 = vector.broadcast %cst_60 : f32 to vector<1x128xf32>
      %119 = arith.addf %115, %118 : vector<1x128xf32>
      %120 = math.rsqrt %119 : vector<1x128xf32>
      %121 = vector.broadcast %120 : vector<1x128xf32> to vector<8x128xf32>
      %122 = arith.mulf %117, %121 : vector<8x128xf32>
      %123 = vector.broadcast %101 : vector<1x128xf32> to vector<8x128xf32>
      %124 = arith.mulf %122, %123 : vector<8x128xf32>
      %125 = vector.broadcast %102 : vector<1x128xf32> to vector<8x128xf32>
      %126 = arith.addf %124, %125 : vector<8x128xf32>
      %cst_61 = arith.constant 0.000000e+00 : f32
      %127 = vector.broadcast %cst_61 : f32 to vector<8x128xf32>
      %128 = arith.maximumf %126, %127 : vector<8x128xf32>
      %129 = arith.truncf %128 : vector<8x128xf32> to vector<8x128xbf16>
      %c0_62 = arith.constant 0 : index
      %c0_63 = arith.constant 0 : index
      %130 = vector.load %arg13[%c0_62, %c0_63] : memref<128x256xbf16, #tpu.memory_space<vmem>>, vector<128x256xbf16>
      %cst_64 = arith.constant dense<0.000000e+00> : vector<8x256xf32>
      %131 = tpu.matmul %129, %130, %cst_64 {dimension_numbers = #tpu.dot_dimension_numbers<[1], [0], [0], [1], [0, 0, 1, 1], [], []>} : vector<8x128xbf16>, vector<128x256xbf16>, vector<8x256xf32> -> vector<8x256xf32>
      %c0_65 = arith.constant 0 : index
      %c0_66 = arith.constant 0 : index
      %132 = vector.load %arg14[%c0_65, %c0_66] : memref<1x256xf32, #tpu.memory_space<vmem>>, vector<1x256xf32>
      %133 = vector.broadcast %132 : vector<1x256xf32> to vector<8x256xf32>
      %134 = arith.addf %131, %133 : vector<8x256xf32>
      %c0_67 = arith.constant 0 : index
      %c0_68 = arith.constant 0 : index
      %135 = vector.load %arg15[%c0_67, %c0_68] : memref<8x256xf32, #tpu.memory_space<vmem>>, vector<8x256xf32>
      tpu.vector_store %arg15[%c0_67, %c0_68], %97 {strides = array<i32>} : memref<8x256xf32, #tpu.memory_space<vmem>>, vector<8x256xf32>,
      %c0_69 = arith.constant 0 : index
      %c0_70 = arith.constant 0 : index
      %136 = vector.load %arg16[%c0_69, %c0_70] : memref<8x256xf32, #tpu.memory_space<vmem>>, vector<8x256xf32>
      tpu.vector_store %arg16[%c0_69, %c0_70], %134 {strides = array<i32>} : memref<8x256xf32, #tpu.memory_space<vmem>>, vector<8x256xf32>,
    } else {
    }
    return
  }
  func.func @transform_0(%arg0: i32) -> (i32, i32) {
    %c0_i32 = arith.constant 0 : i32
    %c0_i32_0 = arith.constant 0 : i32
    return %c0_i32, %arg0 : i32, i32
  }
  func.func @transform_1(%arg0: i32) -> (i32, i32) {
    %c0_i32 = arith.constant 0 : i32
    %c0_i32_0 = arith.constant 0 : i32
    return %arg0, %c0_i32 : i32, i32
  }
  func.func @transform_2(%arg0: i32) -> (i32, i32) {
    %c0_i32 = arith.constant 0 : i32
    %c0_i32_0 = arith.constant 0 : i32
    %c0_i32_1 = arith.constant 0 : i32
    return %c0_i32, %c0_i32_0 : i32, i32
  }
  func.func @transform_3(%arg0: i32) -> (i32, i32) {
    %c0_i32 = arith.constant 0 : i32
    %c0_i32_0 = arith.constant 0 : i32
    %c0_i32_1 = arith.constant 0 : i32
    return %c0_i32, %c0_i32_0 : i32, i32
  }
  func.func @transform_4(%arg0: i32) -> (i32, i32) {
    %c0_i32 = arith.constant 0 : i32
    %c0_i32_0 = arith.constant 0 : i32
    %c0_i32_1 = arith.constant 0 : i32
    return %c0_i32, %c0_i32_0 : i32, i32
  }
  func.func @transform_5(%arg0: i32) -> (i32, i32) {
    %c0_i32 = arith.constant 0 : i32
    %c0_i32_0 = arith.constant 0 : i32
    %c0_i32_1 = arith.constant 0 : i32
    return %c0_i32, %c0_i32_0 : i32, i32
  }
  func.func @transform_6(%arg0: i32) -> (i32, i32) {
    %c0_i32 = arith.constant 0 : i32
    %c0_i32_0 = arith.constant 0 : i32
    %c0_i32_1 = arith.constant 0 : i32
    return %c0_i32, %c0_i32_0 : i32, i32
  }
  func.func @transform_7(%arg0: i32) -> (i32, i32) {
    %c0_i32 = arith.constant 0 : i32
    %c0_i32_0 = arith.constant 0 : i32
    %c0_i32_1 = arith.constant 0 : i32
    return %c0_i32, %c0_i32_0 : i32, i32
  }
  func.func @transform_8(%arg0: i32) -> (i32, i32) {
    %c0_i32 = arith.constant 0 : i32
    %c0_i32_0 = arith.constant 0 : i32
    %c0_i32_1 = arith.constant 0 : i32
    return %c0_i32, %c0_i32_0 : i32, i32
  }
  func.func @transform_9(%arg0: i32) -> (i32, i32) {
    %c0_i32 = arith.constant 0 : i32
    %c0_i32_0 = arith.constant 0 : i32
    %c0_i32_1 = arith.constant 0 : i32
    return %c0_i32, %c0_i32_0 : i32, i32
  }
  func.func @transform_10(%arg0: i32) -> (i32, i32) {
    %c0_i32 = arith.constant 0 : i32
    %c0_i32_0 = arith.constant 0 : i32
    %c0_i32_1 = arith.constant 0 : i32
    return %c0_i32, %c0_i32_0 : i32, i32
  }
  func.func @transform_11(%arg0: i32) -> (i32, i32) {
    %c0_i32 = arith.constant 0 : i32
    %c0_i32_0 = arith.constant 0 : i32
    %c0_i32_1 = arith.constant 0 : i32
    return %c0_i32, %c0_i32_0 : i32, i32
  }
  func.func @transform_12(%arg0: i32) -> (i32, i32) {
    %c0_i32 = arith.constant 0 : i32
    %c0_i32_0 = arith.constant 0 : i32
    %c0_i32_1 = arith.constant 0 : i32
    return %c0_i32, %c0_i32_0 : i32, i32
  }
  func.func @transform_13(%arg0: i32) -> (i32, i32) {
    %c0_i32 = arith.constant 0 : i32
    %c0_i32_0 = arith.constant 0 : i32
    %c0_i32_1 = arith.constant 0 : i32
    return %c0_i32, %c0_i32_0 : i32, i32
  }
  func.func @transform_14(%arg0: i32) -> (i32, i32) {
    %c0_i32 = arith.constant 0 : i32
    %c0_i32_0 = arith.constant 0 : i32
    %c0_i32_1 = arith.constant 0 : i32
    return %c0_i32, %c0_i32_0 : i32, i32
  }
  func.func @transform_15(%arg0: i32) -> (i32, i32) {
    %c0_i32 = arith.constant 0 : i32
    %c0_i32_0 = arith.constant 0 : i32
    %c0_i32_1 = arith.constant 0 : i32
    return %c0_i32, %c0_i32_0 : i32, i32
  }
}

</mosaic_0001>

<llo_original>
// kernel: tpu_custom_call.1
$region0: #{tpu_custom_call.1}
  #allocation0 [shape = 'u32[]', space=smem, size = 0x4, offset = 0x4, fixed_abs, tag = 'smem constant byte address 0x4 - core index']
  #allocation1 [shape = 'u32[72,128]{1,0:T(1,128)}', space=vmem, size = 0x9000, scoped, tag = 'internal scratch']
  #allocation2 [shape = 'f32[8,256]{1,0:T(8,128)}', space=vmem, size = 0x2000, scoped, tag = 'scratch operand']
  %s0 = inlined_call_operand.hbm [shape: bf16[8,1024], index: 0, kind: input, shape index: {}]
  %s1 = inlined_call_operand.hbm [shape: bf16[1024,256], index: 1, kind: input, shape index: {}]
  %s2 = inlined_call_operand.hbm [shape: bf16[256,256], index: 2, kind: input, shape index: {}]
  %s3 = inlined_call_operand.vmem [shape: f32[1,256], index: 3, kind: input, shape index: {}]
  %s4 = inlined_call_operand.hbm [shape: f32[1,256], index: 4, kind: input, shape index: {}]
  %s5 = inlined_call_operand.hbm [shape: bf16[256,256], index: 5, kind: input, shape index: {}]
  %s6 = inlined_call_operand.vmem [shape: f32[1,256], index: 6, kind: input, shape index: {}]
  %s7 = inlined_call_operand.vmem [shape: f32[1,256], index: 7, kind: input, shape index: {}]
  %s8 = inlined_call_operand.hbm [shape: bf16[256,256], index: 8, kind: input, shape index: {}]
  %s9 = inlined_call_operand.hbm [shape: bf16[256,128], index: 9, kind: input, shape index: {}]
  %s10 = inlined_call_operand.vmem [shape: f32[1,128], index: 10, kind: input, shape index: {}]
  %s11 = inlined_call_operand.vmem [shape: f32[1,128], index: 11, kind: input, shape index: {}]
  %s12 = inlined_call_operand.hbm [shape: bf16[128,256], index: 12, kind: input, shape index: {}]
  %s13 = inlined_call_operand.vmem [shape: f32[1,256], index: 13, kind: input, shape index: {}]
  %s14 = inlined_call_operand.hbm [shape: f32[8,256], index: 14, kind: output, shape index: {0}]
  %s15 = inlined_call_operand.hbm [shape: f32[8,256], index: 15, kind: output, shape index: {1}]
  %16 = xla_tuple %s14, %s15
  %s17 = sld [smem:[#allocation0]]
  $region137: #{tpu_custom_call.1} parent=0
    _
  %s19 = ssub.s32 1, %s17
  %s20 = scalar_select 0, %s19, %s17
  $region1: #{tpu_custom_call.1} parent=0
    #allocation3 [shape = 'u8[16384]{0}', space=vmem, size = 0x4000, scoped, tag = 'input window, operand 0']
    #allocation4 [shape = 's32[2]{0}', space=sflag, size = 0x8, scoped, tag = 'scoped memory for tpu_custom_call.1']
    #allocation5 [shape = 's32[2]{0}', space=sflag, size = 0x8, scoped, tag = 'scoped memory for tpu_custom_call.1']
    #allocation6 [shape = 'u8[524288]{0}', space=vmem, size = 0x80000, scoped, tag = 'input window, operand 1']
    #allocation7 [shape = 's32[2]{0}', space=sflag, size = 0x8, scoped, tag = 'scoped memory for tpu_custom_call.1']
    #allocation8 [shape = 'u8[131072]{0}', space=vmem, size = 0x20000, scoped, tag = 'input window, operand 2, single buffered']
    #allocation9 [shape = 'u8[1024]{0}', space=vmem, size = 0x400, scoped, tag = 'input window, operand 4, single buffered']
    #allocation10 [shape = 's32[1]{0}', space=sflag, size = 0x4, scoped, tag = 'scoped memory for tpu_custom_call.1']
    #allocation11 [shape = 'u8[131072]{0}', space=vmem, size = 0x20000, scoped, tag = 'input window, operand 5, single buffered']
    #allocation12 [shape = 'u8[131072]{0}', space=vmem, size = 0x20000, scoped, tag = 'input window, operand 8, single buffered']
    #allocation13 [shape = 's32[1]{0}', space=sflag, size = 0x4, scoped, tag = 'scoped memory for tpu_custom_call.1']
    #allocation14 [shape = 'u8[65536]{0}', space=vmem, size = 0x10000, scoped, tag = 'input window, operand 9, single buffered']
    #allocation15 [shape = 'u8[65536]{0}', space=vmem, size = 0x10000, scoped, tag = 'input window, operand 12, single buffered']
    #allocation16 [shape = 's32[1]{0}', space=sflag, size = 0x4, scoped, tag = 'scoped memory for tpu_custom_call.1']
    #allocation17 [shape = 'u8[8192]{0}', space=vmem, size = 0x2000, scoped, tag = 'output window, operand 0, single buffered']
    #allocation18 [shape = 'u8[8192]{0}', space=vmem, size = 0x2000, scoped, tag = 'output window, operand 1, single buffered']
    #allocation19 [shape = 's32[1]{0}', space=sflag, size = 0x4, scoped, tag = 'scoped memory for tpu_custom_call.1']
    %21 = vsyncpa [#allocation4], 0
    %s22 = scalar_lea.sflag [#allocation4], 1
    %23 = vsyncpa %s22, 0
    %24 = vsyncpa [#allocation7], 0
    %s25 = scalar_lea.sflag [#allocation7], 1
    %26 = vsyncpa %s25, 0
    %27 = vsyncpa [#allocation10], 0
    %28 = vsyncpa [#allocation13], 0
    %29 = vsyncpa [#allocation16], 0
    %30 = vsyncpa [#allocation5], 0
    %31 = vsyncpa [#allocation19], 0
    loop: start=0, step=1, limit=4
    $region2: #{tpu_custom_call.1} parent=1 // loop_pre_header
      _
    $region3: #{tpu_custom_call.1} parent=1 // loop_header
      %s33 = sphi 0, %s37
      %p34 = scmp.ge.s32.totalorder %s33, 4
      %s43 = sphi 0, %s45
      %s46 = sphi 0, %s43
      %s47 = sphi 0, %s46
      %s63 = sphi 0, %s47
      %s69 = sphi 0, %s71
      %s72 = sphi 0, %s69
      %s73 = sphi 0, %s72
      %s89 = sphi 0, %s73
      %s93 = sphi 0, %s93
      %s95 = sphi 0, %s93
      %s96 = sphi 0, %s95
      %s110 = sphi 0, %s96
      %s114 = sphi 0, %s114
      %s116 = sphi 0, %s114
      %s117 = sphi 0, %s116
      %s131 = sphi 0, %s117
      %s135 = sphi 0, %s135
      %s137 = sphi 0, %s135
      %s138 = sphi 0, %s137
      %s152 = sphi 0, %s138
      %s156 = sphi 0, %s156
      %s158 = sphi 0, %s156
      %s159 = sphi 0, %s158
      %s173 = sphi 0, %s159
      %s177 = sphi 0, %s177
      %s179 = sphi 0, %s177
      %s180 = sphi 0, %s179
      %s194 = sphi 0, %s180
      %s198 = sphi 0, %s198
      %s200 = sphi 0, %s198
      %s201 = sphi 0, %s200
      %s215 = sphi 0, %s201
      %s219 = sphi 0, %s219
      %s221 = sphi 0, %s219
      %s222 = sphi 0, %s221
      %s236 = sphi 0, %s222
      %s240 = sphi 0, %s240
      %s242 = sphi 0, %s240
      %s243 = sphi 0, %s242
      %s257 = sphi 0, %s243
      %s261 = sphi 0, %s261
      %s263 = sphi 0, %s261
      %s264 = sphi 0, %s263
      %s278 = sphi 0, %s264
      %s282 = sphi 0, %s282
      %s284 = sphi 0, %s282
      %s285 = sphi 0, %s284
      %s299 = sphi 0, %s285
      %s303 = sphi 0, %s303
      %s305 = sphi 0, %s303
      %s306 = sphi 0, %s305
      %s320 = sphi 0, %s306
      %s324 = sphi 0, %s324
      %s326 = sphi 0, %s324
      %s327 = sphi 0, %s326
      %s341 = sphi 0, %s327
      %s345 = sphi 0, %s345
      %s347 = sphi 0, %s345
      %s348 = sphi 0, %s347
      %s362 = sphi 0, %s348
      %s366 = sphi 0, %s366
      %s368 = sphi 0, %s366
      %s369 = sphi 0, %s368
      %s383 = sphi 0, %s369
    $region4: #{tpu_custom_call.1} parent=1 // loop_header_branch
      %36 = sbr.rel (%p34) target = $region8
    $region5: #{tpu_custom_call.1} parent=1 // loop_body
      %s38 = ssub.s32 %s33, 1
      %s39 = ssub.s32 %s33, 2
      %s40 = sadd.s32 %s33, 1
      %s41 = ssub.s32 %s33, %s40
      %p42 = scmp.eq.s32.totalorder %s41, 0
      %s44 = sadd.s32 %s43, 1
      %s45 = scalar_select %p42, %s43, %s44
      %p48 = pneg %p42
      %p49 = scmp.eq.s32.totalorder %s33, 1
      %p50 = por %p48, %p49
      %p51 = scmp.ne.s32.totalorder %s43, %s46
      %p52 = scmp.eq.s32.totalorder %s33, 0
      %p53 = por %p51, %p52
      %p54 = scmp.ne.s32.totalorder %s43, %s46
      %p55 = scmp.eq.s32.totalorder %s38, 1
      %p56 = por %p54, %p55
      %p57 = scmp.ne.s32.totalorder %s46, %s47
      %p58 = scmp.eq.s32.totalorder %s38, 0
      %p59 = por %p57, %p58
      %p60 = scmp.ne.s32.totalorder %s46, %s47
      %p61 = scmp.eq.s32.totalorder %s39, 1
      %p62 = por %p60, %p61
      %p64 = scmp.ne.s32.totalorder %s47, %s63
      %p65 = scmp.eq.s32.totalorder %s39, 0
      %p66 = por %p64, %p65
      %s67 = ssub.s32 %s33, %s40
      %p68 = scmp.eq.s32.totalorder %s67, 0
      %s70 = sadd.s32 %s69, 1
      %s71 = scalar_select %p68, %s69, %s70
      %p74 = pneg %p68
      %p75 = scmp.eq.s32.totalorder %s33, 1
      %p76 = por %p74, %p75
      %p77 = scmp.ne.s32.totalorder %s69, %s72
      %p78 = scmp.eq.s32.totalorder %s33, 0
      %p79 = por %p77, %p78
      %p80 = scmp.ne.s32.totalorder %s69, %s72
      %p81 = scmp.eq.s32.totalorder %s38, 1
      %p82 = por %p80, %p81
      %p83 = scmp.ne.s32.totalorder %s72, %s73
      %p84 = scmp.eq.s32.totalorder %s38, 0
      %p85 = por %p83, %p84
      %p86 = scmp.ne.s32.totalorder %s72, %s73
      %p87 = scmp.eq.s32.totalorder %s39, 1
      %p88 = por %p86, %p87
      %p90 = scmp.ne.s32.totalorder %s73, %s89
      %p91 = scmp.eq.s32.totalorder %s39, 0
      %p92 = por %p90, %p91
      %s94 = sadd.s32 %s93, 1
      %p97 = scmp.eq.s32.totalorder %s33, 1
      %p98 = scmp.ne.s32.totalorder %s93, %s95
      %p99 = scmp.eq.s32.totalorder %s33, 0
      %p100 = por %p98, %p99
      %p101 = scmp.ne.s32.totalorder %s93, %s95
      %p102 = scmp.eq.s32.totalorder %s38, 1
      %p103 = por %p101, %p102
      %p104 = scmp.ne.s32.totalorder %s95, %s96
      %p105 = scmp.eq.s32.totalorder %s38, 0
      %p106 = por %p104, %p105
      %p107 = scmp.ne.s32.totalorder %s95, %s96
      %p108 = scmp.eq.s32.totalorder %s39, 1
      %p109 = por %p107, %p108
      %p111 = scmp.ne.s32.totalorder %s96, %s110
      %p112 = scmp.eq.s32.totalorder %s39, 0
      %p113 = por %p111, %p112
      %s115 = sadd.s32 %s114, 1
      %p118 = scmp.eq.s32.totalorder %s33, 1
      %p119 = scmp.ne.s32.totalorder %s114, %s116
      %p120 = scmp.eq.s32.totalorder %s33, 0
      %p121 = por %p119, %p120
      %p122 = scmp.ne.s32.totalorder %s114, %s116
      %p123 = scmp.eq.s32.totalorder %s38, 1
      %p124 = por %p122, %p123
      %p125 = scmp.ne.s32.totalorder %s116, %s117
      %p126 = scmp.eq.s32.totalorder %s38, 0
      %p127 = por %p125, %p126
      %p128 = scmp.ne.s32.totalorder %s116, %s117
      %p129 = scmp.eq.s32.totalorder %s39, 1
      %p130 = por %p128, %p129
      %p132 = scmp.ne.s32.totalorder %s117, %s131
      %p133 = scmp.eq.s32.totalorder %s39, 0
      %p134 = por %p132, %p133
      %s136 = sadd.s32 %s135, 1
      %p139 = scmp.eq.s32.totalorder %s33, 1
      %p140 = scmp.ne.s32.totalorder %s135, %s137
      %p141 = scmp.eq.s32.totalorder %s33, 0
      %p142 = por %p140, %p141
      %p143 = scmp.ne.s32.totalorder %s135, %s137
      %p144 = scmp.eq.s32.totalorder %s38, 1
      %p145 = por %p143, %p144
      %p146 = scmp.ne.s32.totalorder %s137, %s138
      %p147 = scmp.eq.s32.totalorder %s38, 0
      %p148 = por %p146, %p147
      %p149 = scmp.ne.s32.totalorder %s137, %s138
      %p150 = scmp.eq.s32.totalorder %s39, 1
      %p151 = por %p149, %p150
      %p153 = scmp.ne.s32.totalorder %s138, %s152
      %p154 = scmp.eq.s32.totalorder %s39, 0
      %p155 = por %p153, %p154
      %s157 = sadd.s32 %s156, 1
      %p160 = scmp.eq.s32.totalorder %s33, 1
      %p161 = scmp.ne.s32.totalorder %s156, %s158
      %p162 = scmp.eq.s32.totalorder %s33, 0
      %p163 = por %p161, %p162
      %p164 = scmp.ne.s32.totalorder %s156, %s158
      %p165 = scmp.eq.s32.totalorder %s38, 1
      %p166 = por %p164, %p165
      %p167 = scmp.ne.s32.totalorder %s158, %s159
      %p168 = scmp.eq.s32.totalorder %s38, 0
      %p169 = por %p167, %p168
      %p170 = scmp.ne.s32.totalorder %s158, %s159
      %p171 = scmp.eq.s32.totalorder %s39, 1
      %p172 = por %p170, %p171
      %p174 = scmp.ne.s32.totalorder %s159, %s173
      %p175 = scmp.eq.s32.totalorder %s39, 0
      %p176 = por %p174, %p175
      %s178 = sadd.s32 %s177, 1
      %p181 = scmp.eq.s32.totalorder %s33, 1
      %p182 = scmp.ne.s32.totalorder %s177, %s179
      %p183 = scmp.eq.s32.totalorder %s33, 0
      %p184 = por %p182, %p183
      %p185 = scmp.ne.s32.totalorder %s177, %s179
      %p186 = scmp.eq.s32.totalorder %s38, 1
      %p187 = por %p185, %p186
      %p188 = scmp.ne.s32.totalorder %s179, %s180
      %p189 = scmp.eq.s32.totalorder %s38, 0
      %p190 = por %p188, %p189
      %p191 = scmp.ne.s32.totalorder %s179, %s180
      %p192 = scmp.eq.s32.totalorder %s39, 1
      %p193 = por %p191, %p192
      %p195 = scmp.ne.s32.totalorder %s180, %s194
      %p196 = scmp.eq.s32.totalorder %s39, 0
      %p197 = por %p195, %p196
      %s199 = sadd.s32 %s198, 1
      %p202 = scmp.eq.s32.totalorder %s33, 1
      %p203 = scmp.ne.s32.totalorder %s198, %s200
      %p204 = scmp.eq.s32.totalorder %s33, 0
      %p205 = por %p203, %p204
      %p206 = scmp.ne.s32.totalorder %s198, %s200
      %p207 = scmp.eq.s32.totalorder %s38, 1
      %p208 = por %p206, %p207
      %p209 = scmp.ne.s32.totalorder %s200, %s201
      %p210 = scmp.eq.s32.totalorder %s38, 0
      %p211 = por %p209, %p210
      %p212 = scmp.ne.s32.totalorder %s200, %s201
      %p213 = scmp.eq.s32.totalorder %s39, 1
      %p214 = por %p212, %p213
      %p216 = scmp.ne.s32.totalorder %s201, %s215
      %p217 = scmp.eq.s32.totalorder %s39, 0
      %p218 = por %p216, %p217
      %s220 = sadd.s32 %s219, 1
      %p223 = scmp.eq.s32.totalorder %s33, 1
      %p224 = scmp.ne.s32.totalorder %s219, %s221
      %p225 = scmp.eq.s32.totalorder %s33, 0
      %p226 = por %p224, %p225
      %p227 = scmp.ne.s32.totalorder %s219, %s221
      %p228 = scmp.eq.s32.totalorder %s38, 1
      %p229 = por %p227, %p228
      %p230 = scmp.ne.s32.totalorder %s221, %s222
      %p231 = scmp.eq.s32.totalorder %s38, 0
      %p232 = por %p230, %p231
      %p233 = scmp.ne.s32.totalorder %s221, %s222
      %p234 = scmp.eq.s32.totalorder %s39, 1
      %p235 = por %p233, %p234
      %p237 = scmp.ne.s32.totalorder %s222, %s236
      %p238 = scmp.eq.s32.totalorder %s39, 0
      %p239 = por %p237, %p238
      %s241 = sadd.s32 %s240, 1
      %p244 = scmp.eq.s32.totalorder %s33, 1
      %p245 = scmp.ne.s32.totalorder %s240, %s242
      %p246 = scmp.eq.s32.totalorder %s33, 0
      %p247 = por %p245, %p246
      %p248 = scmp.ne.s32.totalorder %s240, %s242
      %p249 = scmp.eq.s32.totalorder %s38, 1
      %p250 = por %p248, %p249
      %p251 = scmp.ne.s32.totalorder %s242, %s243
      %p252 = scmp.eq.s32.totalorder %s38, 0
      %p253 = por %p251, %p252
      %p254 = scmp.ne.s32.totalorder %s242, %s243
      %p255 = scmp.eq.s32.totalorder %s39, 1
      %p256 = por %p254, %p255
      %p258 = scmp.ne.s32.totalorder %s243, %s257
      %p259 = scmp.eq.s32.totalorder %s39, 0
      %p260 = por %p258, %p259
      %s262 = sadd.s32 %s261, 1
      %p265 = scmp.eq.s32.totalorder %s33, 1
      %p266 = scmp.ne.s32.totalorder %s261, %s263
      %p267 = scmp.eq.s32.totalorder %s33, 0
      %p268 = por %p266, %p267
      %p269 = scmp.ne.s32.totalorder %s261, %s263
      %p270 = scmp.eq.s32.totalorder %s38, 1
      %p271 = por %p269, %p270
      %p272 = scmp.ne.s32.totalorder %s263, %s264
      %p273 = scmp.eq.s32.totalorder %s38, 0
      %p274 = por %p272, %p273
      %p275 = scmp.ne.s32.totalorder %s263, %s264
      %p276 = scmp.eq.s32.totalorder %s39, 1
      %p277 = por %p275, %p276
      %p279 = scmp.ne.s32.totalorder %s264, %s278
      %p280 = scmp.eq.s32.totalorder %s39, 0
      %p281 = por %p279, %p280
      %s283 = sadd.s32 %s282, 1
      %p286 = scmp.eq.s32.totalorder %s33, 1
      %p287 = scmp.ne.s32.totalorder %s282, %s284
      %p288 = scmp.eq.s32.totalorder %s33, 0
      %p289 = por %p287, %p288
      %p290 = scmp.ne.s32.totalorder %s282, %s284
      %p291 = scmp.eq.s32.totalorder %s38, 1
      %p292 = por %p290, %p291
      %p293 = scmp.ne.s32.totalorder %s284, %s285
      %p294 = scmp.eq.s32.totalorder %s38, 0
      %p295 = por %p293, %p294
      %p296 = scmp.ne.s32.totalorder %s284, %s285
      %p297 = scmp.eq.s32.totalorder %s39, 1
      %p298 = por %p296, %p297
      %p300 = scmp.ne.s32.totalorder %s285, %s299
      %p301 = scmp.eq.s32.totalorder %s39, 0
      %p302 = por %p300, %p301
      %s304 = sadd.s32 %s303, 1
      %p307 = scmp.eq.s32.totalorder %s33, 1
      %p308 = scmp.ne.s32.totalorder %s303, %s305
      %p309 = scmp.eq.s32.totalorder %s33, 0
      %p310 = por %p308, %p309
      %p311 = scmp.ne.s32.totalorder %s303, %s305
      %p312 = scmp.eq.s32.totalorder %s38, 1
      %p313 = por %p311, %p312
      %p314 = scmp.ne.s32.totalorder %s305, %s306
      %p315 = scmp.eq.s32.totalorder %s38, 0
      %p316 = por %p314, %p315
      %p317 = scmp.ne.s32.totalorder %s305, %s306
      %p318 = scmp.eq.s32.totalorder %s39, 1
      %p319 = por %p317, %p318
      %p321 = scmp.ne.s32.totalorder %s306, %s320
      %p322 = scmp.eq.s32.totalorder %s39, 0
      %p323 = por %p321, %p322
      %s325 = sadd.s32 %s324, 1
      %p328 = scmp.eq.s32.totalorder %s33, 1
      %p329 = scmp.ne.s32.totalorder %s324, %s326
      %p330 = scmp.eq.s32.totalorder %s33, 0
      %p331 = por %p329, %p330
      %p332 = scmp.ne.s32.totalorder %s324, %s326
      %p333 = scmp.eq.s32.totalorder %s38, 1
      %p334 = por %p332, %p333
      %p335 = scmp.ne.s32.totalorder %s326, %s327
      %p336 = scmp.eq.s32.totalorder %s38, 0
      %p337 = por %p335, %p336
      %p338 = scmp.ne.s32.totalorder %s326, %s327
      %p339 = scmp.eq.s32.totalorder %s39, 1
      %p340 = por %p338, %p339
      %p342 = scmp.ne.s32.totalorder %s327, %s341
      %p343 = scmp.eq.s32.totalorder %s39, 0
      %p344 = por %p342, %p343
      %s346 = sadd.s32 %s345, 1
      %p349 = scmp.eq.s32.totalorder %s33, 1
      %p350 = scmp.ne.s32.totalorder %s345, %s347
      %p351 = scmp.eq.s32.totalorder %s33, 0
      %p352 = por %p350, %p351
      %p353 = scmp.ne.s32.totalorder %s345, %s347
      %p354 = scmp.eq.s32.totalorder %s38, 1
      %p355 = por %p353, %p354
      %p356 = scmp.ne.s32.totalorder %s347, %s348
      %p357 = scmp.eq.s32.totalorder %s38, 0
      %p358 = por %p356, %p357
      %p359 = scmp.ne.s32.totalorder %s347, %s348
      %p360 = scmp.eq.s32.totalorder %s39, 1
      %p361 = por %p359, %p360
      %p363 = scmp.ne.s32.totalorder %s348, %s362
      %p364 = scmp.eq.s32.totalorder %s39, 0
      %p365 = por %p363, %p364
      %s367 = sadd.s32 %s366, 1
      %p370 = scmp.eq.s32.totalorder %s33, 1
      %p371 = scmp.ne.s32.totalorder %s366, %s368
      %p372 = scmp.eq.s32.totalorder %s33, 0
      %p373 = por %p371, %p372
      %p374 = scmp.ne.s32.totalorder %s366, %s368
      %p375 = scmp.eq.s32.totalorder %s38, 1
      %p376 = por %p374, %p375
      %p377 = scmp.ne.s32.totalorder %s368, %s369
      %p378 = scmp.eq.s32.totalorder %s38, 0
      %p379 = por %p377, %p378
      %p380 = scmp.ne.s32.totalorder %s368, %s369
      %p381 = scmp.eq.s32.totalorder %s39, 1
      %p382 = por %p380, %p381
      %p384 = scmp.ne.s32.totalorder %s369, %s383
      %p385 = scmp.eq.s32.totalorder %s39, 0
      %p386 = por %p384, %p385
      %p387 = scmp.le.s32.totalorder 1, %s33
      %p388 = scmp.lt.s32.totalorder %s33, 3
      %p389 = pnand %p387, %p388
      %p390 = pneg %p389
      // Predicated region
      $region9: #{tpu_custom_call.1} parent=5 // pred_check
        _
      $region10: #{tpu_custom_call.1} parent=5 // pred_check_branch
        %392 = sbr.rel (%p389) target = $region12
      $region11: #{tpu_custom_call.1} parent=5 // pred_region
        %s393 = ssub.s32 %s33, 1
        // Predicated region
        $region13: #{tpu_custom_call.1} parent=11 // pred_check
          %p394 = pneg %p106
        $region14: #{tpu_custom_call.1} parent=11 // pred_check_branch
          %396 = sbr.rel (%p394) target = $region16
        $region15: #{tpu_custom_call.1} parent=11 // pred_region
          %398 = vsyncadd [#allocation7], 0
          %s399 = sshll.u32 %s2, 4
          %s400 = int_to_ptr.hbm [resolvable:$true] %s399
          %s401 = sshll.u32 [#allocation8], 4
          %s402 = int_to_ptr.vmem [resolvable:$true] %s401
          %407 = dma.hbm_to_vmem [thread:$0]  %s400, 4096, %s402, [#allocation7], 128, 128, 8
        $region16: #{tpu_custom_call.1} parent=11 // pred_fallthru
          _
        // Predicated region
        $region17: #{tpu_custom_call.1} parent=11 // pred_check
          %p408 = pneg %p127
        $region18: #{tpu_custom_call.1} parent=11 // pred_check_branch
          %410 = sbr.rel (%p408) target = $region20
        $region19: #{tpu_custom_call.1} parent=11 // pred_region
          _
        $region20: #{tpu_custom_call.1} parent=11 // pred_fallthru
          _
        // Predicated region
        $region21: #{tpu_custom_call.1} parent=11 // pred_check
          %p411 = pneg %p148
        $region22: #{tpu_custom_call.1} parent=11 // pred_check_branch
          %413 = sbr.rel (%p411) target = $region24
        $region23: #{tpu_custom_call.1} parent=11 // pred_region
          %415 = vsyncadd [#allocation10], 0
          %s417 = sshll.u32 %s4, 4
          %s418 = int_to_ptr.hbm [resolvable:$true] %s417
          %s419 = sshll.u32 [#allocation9], 4
          %s420 = int_to_ptr.vmem [resolvable:$true] %s419
          %422 = dma.hbm_to_vmem [thread:$0]  %s418, 32, %s420, [#allocation10]
        $region24: #{tpu_custom_call.1} parent=11 // pred_fallthru
          _
        // Predicated region
        $region25: #{tpu_custom_call.1} parent=11 // pred_check
          %p423 = pneg %p169
        $region26: #{tpu_custom_call.1} parent=11 // pred_check_branch
          %425 = sbr.rel (%p423) target = $region28
        $region27: #{tpu_custom_call.1} parent=11 // pred_region
          %427 = vsyncadd [#allocation10], 0
          %s428 = sshll.u32 %s5, 4
          %s429 = int_to_ptr.hbm [resolvable:$true] %s428
          %s430 = sshll.u32 [#allocation11], 4
          %s431 = int_to_ptr.vmem [resolvable:$true] %s430
          %436 = dma.hbm_to_vmem [thread:$0]  %s429, 4096, %s431, [#allocation10], 128, 128, 8
        $region28: #{tpu_custom_call.1} parent=11 // pred_fallthru
          _
        // Predicated region
        $region29: #{tpu_custom_call.1} parent=11 // pred_check
          %p437 = pneg %p190
        $region30: #{tpu_custom_call.1} parent=11 // pred_check_branch
          %439 = sbr.rel (%p437) target = $region32
        $region31: #{tpu_custom_call.1} parent=11 // pred_region
          _
        $region32: #{tpu_custom_call.1} parent=11 // pred_fallthru
          _
        // Predicated region
        $region33: #{tpu_custom_call.1} parent=11 // pred_check
          %p440 = pneg %p211
        $region34: #{tpu_custom_call.1} parent=11 // pred_check_branch
          %442 = sbr.rel (%p440) target = $region36
        $region35: #{tpu_custom_call.1} parent=11 // pred_region
          _
        $region36: #{tpu_custom_call.1} parent=11 // pred_fallthru
          _
        // Predicated region
        $region37: #{tpu_custom_call.1} parent=11 // pred_check
          %p443 = pneg %p232
        $region38: #{tpu_custom_call.1} parent=11 // pred_check_branch
          %445 = sbr.rel (%p443) target = $region40
        $region39: #{tpu_custom_call.1} parent=11 // pred_region
          %447 = vsyncadd [#allocation13], 0
          %s448 = sshll.u32 %s8, 4
          %s449 = int_to_ptr.hbm [resolvable:$true] %s448
          %s450 = sshll.u32 [#allocation12], 4
          %s451 = int_to_ptr.vmem [resolvable:$true] %s450
          %456 = dma.hbm_to_vmem [thread:$0]  %s449, 4096, %s451, [#allocation13], 128, 128, 8
        $region40: #{tpu_custom_call.1} parent=11 // pred_fallthru
          _
        // Predicated region
        $region41: #{tpu_custom_call.1} parent=11 // pred_check
          %p457 = pneg %p253
        $region42: #{tpu_custom_call.1} parent=11 // pred_check_branch
          %459 = sbr.rel (%p457) target = $region44
        $region43: #{tpu_custom_call.1} parent=11 // pred_region
          %461 = vsyncadd [#allocation13], 0
          %s462 = sshll.u32 %s9, 4
          %s463 = int_to_ptr.hbm [resolvable:$true] %s462
          %s464 = sshll.u32 [#allocation14], 4
          %s465 = int_to_ptr.vmem [resolvable:$true] %s464
          %470 = dma.hbm_to_vmem [thread:$0]  %s463, 2048, %s465, [#allocation13], 64, 64, 4
        $region44: #{tpu_custom_call.1} parent=11 // pred_fallthru
          _
        // Predicated region
        $region45: #{tpu_custom_call.1} parent=11 // pred_check
          %p471 = pneg %p274
        $region46: #{tpu_custom_call.1} parent=11 // pred_check_branch
          %473 = sbr.rel (%p471) target = $region48
        $region47: #{tpu_custom_call.1} parent=11 // pred_region
          _
        $region48: #{tpu_custom_call.1} parent=11 // pred_fallthru
          _
        // Predicated region
        $region49: #{tpu_custom_call.1} parent=11 // pred_check
          %p474 = pneg %p295
        $region50: #{tpu_custom_call.1} parent=11 // pred_check_branch
          %476 = sbr.rel (%p474) target = $region52
        $region51: #{tpu_custom_call.1} parent=11 // pred_region
          _
        $region52: #{tpu_custom_call.1} parent=11 // pred_fallthru
          _
        // Predicated region
        $region53: #{tpu_custom_call.1} parent=11 // pred_check
          %p477 = pneg %p316
        $region54: #{tpu_custom_call.1} parent=11 // pred_check_branch
          %479 = sbr.rel (%p477) target = $region56
        $region55: #{tpu_custom_call.1} parent=11 // pred_region
          %481 = vsyncadd [#allocation16], 0
          %s482 = sshll.u32 %s12, 4
          %s483 = int_to_ptr.hbm [resolvable:$true] %s482
          %s484 = sshll.u32 [#allocation15], 4
          %s485 = int_to_ptr.vmem [resolvable:$true] %s484
          %490 = dma.hbm_to_vmem [thread:$0]  %s483, 2048, %s485, [#allocation16], 128, 128, 8
        $region56: #{tpu_custom_call.1} parent=11 // pred_fallthru
          _
        // Predicated region
        $region57: #{tpu_custom_call.1} parent=11 // pred_check
          %p491 = pneg %p337
        $region58: #{tpu_custom_call.1} parent=11 // pred_check_branch
          %493 = sbr.rel (%p491) target = $region60
        $region59: #{tpu_custom_call.1} parent=11 // pred_region
          _
        $region60: #{tpu_custom_call.1} parent=11 // pred_fallthru
          _
      $region12: #{tpu_custom_call.1} parent=5 // pred_fallthru
        _
      %p494 = scmp.lt.s32.totalorder %s33, 2
      // Predicated region
      $region61: #{tpu_custom_call.1} parent=5 // pred_check
        %p495 = pneg %p494
      $region62: #{tpu_custom_call.1} parent=5 // pred_check_branch
        %497 = sbr.rel (%p495) target = $region64
      $region63: #{tpu_custom_call.1} parent=5 // pred_region
        // Predicated region
        $region65: #{tpu_custom_call.1} parent=63 // pred_check
          %p498 = pneg %p53
        $region66: #{tpu_custom_call.1} parent=63 // pred_check_branch
          %500 = sbr.rel (%p498) target = $region68
        $region67: #{tpu_custom_call.1} parent=63 // pred_region
          %s501 = sand.u32 %s43, 1
          %s502 = scalar_lea.sflag [#allocation4], %s501
          %s503 = sand.u32 %s43, 1
          %s504 = smul.addr %s503, 16
          %s505 = scalar_lea.vmem [#allocation3], %s504
          %s506 = smul.u32 4, %s33
          %508 = vsyncadd %s502, 0
          %s509 = smul.addr %s506, 4
          %s510 = scalar_lea.hbm %s0, %s509
          %s512 = sshll.u32 %s510, 4
          %s513 = int_to_ptr.hbm [resolvable:$true] %s512
          %s514 = sshll.u32 %s505, 4
          %s515 = int_to_ptr.vmem [resolvable:$true] %s514
          %517 = dma.hbm_to_vmem [thread:$0]  %s513, 256, %s515, %s502
        $region68: #{tpu_custom_call.1} parent=63 // pred_fallthru
          _
        // Predicated region
        $region69: #{tpu_custom_call.1} parent=63 // pred_check
          %p518 = pneg %p79
        $region70: #{tpu_custom_call.1} parent=63 // pred_check_branch
          %520 = sbr.rel (%p518) target = $region72
        $region71: #{tpu_custom_call.1} parent=63 // pred_region
          %s521 = sand.u32 %s33, 1
          %s522 = scalar_lea.sflag [#allocation7], %s521
          %s523 = sand.u32 %s69, 1
          %s524 = smul.addr %s523, 512
          %s525 = scalar_lea.vmem [#allocation6], %s524
          %s526 = smul.u32 64, %s33
          %528 = vsyncadd %s522, 0
          %s529 = smul.addr %s526, 2
          %s530 = smul.addr %s529, 4
          %s531 = scalar_lea.hbm %s1, %s530
          %s532 = sshll.u32 %s531, 4
          %s533 = int_to_ptr.hbm [resolvable:$true] %s532
          %s534 = sshll.u32 %s525, 4
          %s535 = int_to_ptr.vmem [resolvable:$true] %s534
          %540 = dma.hbm_to_vmem [thread:$0]  %s533, 8192, %s535, %s522, 128, 128, 8
        $region72: #{tpu_custom_call.1} parent=63 // pred_fallthru
          _
      $region64: #{tpu_custom_call.1} parent=5 // pred_fallthru
        _
      %p541 = scmp.le.s32.totalorder 1, %s33
      %p542 = scmp.lt.s32.totalorder %s33, 3
      %p543 = pnand %p541, %p542
      %p544 = pneg %p543
      // Predicated region
      $region73: #{tpu_custom_call.1} parent=5 // pred_check
        _
      $region74: #{tpu_custom_call.1} parent=5 // pred_check_branch
        %546 = sbr.rel (%p543) target = $region76
      $region75: #{tpu_custom_call.1} parent=5 // pred_region
        %s547 = ssub.s32 %s33, 1
        %s548 = sand.u32 %s46, 1
        %s549 = scalar_lea.sflag [#allocation4], %s548
        %s550 = sand.u32 %s46, 1
        %s551 = smul.addr %s550, 16
        %s552 = scalar_lea.vmem [#allocation3], %s551
        // Predicated region
        $region77: #{tpu_custom_call.1} parent=75 // pred_check
          %p553 = pneg %p59
        $region78: #{tpu_custom_call.1} parent=75 // pred_check_branch
          %555 = sbr.rel (%p553) target = $region80
        $region79: #{tpu_custom_call.1} parent=75 // pred_region
          %557 = dma.done %s549, 256
        $region80: #{tpu_custom_call.1} parent=75 // pred_fallthru
          _
        %s558 = sand.u32 %s38, 1
        %s559 = scalar_lea.sflag [#allocation7], %s558
        %s560 = sand.u32 %s72, 1
        %s561 = smul.addr %s560, 512
        %s562 = scalar_lea.vmem [#allocation6], %s561
        // Predicated region
        $region81: #{tpu_custom_call.1} parent=75 // pred_check
          %p563 = pneg %p85
        $region82: #{tpu_custom_call.1} parent=75 // pred_check_branch
          %565 = sbr.rel (%p563) target = $region84
        $region83: #{tpu_custom_call.1} parent=75 // pred_region
          %567 = dma.done %s559, 8192
        $region84: #{tpu_custom_call.1} parent=75 // pred_fallthru
          _
        // Predicated region
        $region85: #{tpu_custom_call.1} parent=75 // pred_check
          %p568 = pneg %p106
        $region86: #{tpu_custom_call.1} parent=75 // pred_check_branch
          %570 = sbr.rel (%p568) target = $region88
        $region87: #{tpu_custom_call.1} parent=75 // pred_region
          %572 = dma.done [#allocation7], 4096
        $region88: #{tpu_custom_call.1} parent=75 // pred_fallthru
          _
        // Predicated region
        $region89: #{tpu_custom_call.1} parent=75 // pred_check
          %p573 = pneg %p148
        $region90: #{tpu_custom_call.1} parent=75 // pred_check_branch
          %575 = sbr.rel (%p573) target = $region92
        $region91: #{tpu_custom_call.1} parent=75 // pred_region
          %577 = dma.done [#allocation10], 32
        $region92: #{tpu_custom_call.1} parent=75 // pred_fallthru
          _
        // Predicated region
        $region93: #{tpu_custom_call.1} parent=75 // pred_check
          %p578 = pneg %p169
        $region94: #{tpu_custom_call.1} parent=75 // pred_check_branch
          %580 = sbr.rel (%p578) target = $region96
        $region95: #{tpu_custom_call.1} parent=75 // pred_region
          %582 = dma.done [#allocation10], 4096
        $region96: #{tpu_custom_call.1} parent=75 // pred_fallthru
          _
        // Predicated region
        $region97: #{tpu_custom_call.1} parent=75 // pred_check
          %p583 = pneg %p232
        $region98: #{tpu_custom_call.1} parent=75 // pred_check_branch
          %585 = sbr.rel (%p583) target = $region100
        $region99: #{tpu_custom_call.1} parent=75 // pred_region
          %587 = dma.done [#allocation13], 4096
        $region100: #{tpu_custom_call.1} parent=75 // pred_fallthru
          _
        // Predicated region
        $region101: #{tpu_custom_call.1} parent=75 // pred_check
          %p588 = pneg %p253
        $region102: #{tpu_custom_call.1} parent=75 // pred_check_branch
          %590 = sbr.rel (%p588) target = $region104
        $region103: #{tpu_custom_call.1} parent=75 // pred_region
          %592 = dma.done [#allocation13], 2048
        $region104: #{tpu_custom_call.1} parent=75 // pred_fallthru
          _
        // Predicated region
        $region105: #{tpu_custom_call.1} parent=75 // pred_check
          %p593 = pneg %p316
        $region106: #{tpu_custom_call.1} parent=75 // pred_check_branch
          %595 = sbr.rel (%p593) target = $region108
        $region107: #{tpu_custom_call.1} parent=75 // pred_region
          %597 = dma.done [#allocation16], 2048
        $region108: #{tpu_custom_call.1} parent=75 // pred_fallthru
          _
        %s598 = sand.u32 %s46, 1
        %s599 = scalar_lea.sflag [#allocation4], %s598
        %s600 = sand.u32 %s46, 1
        %s601 = smul.addr %s600, 16
        %s602 = scalar_lea.vmem [#allocation3], %s601
        %p603 = pneg %p59
        %p604 = pneg %p56
        %s605 = sand.u32 %s38, 1
        %s606 = scalar_lea.sflag [#allocation7], %s605
        %s607 = sand.u32 %s72, 1
        %s608 = smul.addr %s607, 512
        %s609 = scalar_lea.vmem [#allocation6], %s608
        %p610 = pneg %p85
        %p611 = pneg %p82
        %p612 = pneg %p106
        %p613 = pneg %p103
        %p614 = pneg %p127
        %p615 = pneg %p124
        %p616 = pneg %p148
        %p617 = pneg %p145
        %p618 = pneg %p169
        %p619 = pneg %p166
        %p620 = pneg %p190
        %p621 = pneg %p187
        %p622 = pneg %p211
        %p623 = pneg %p208
        %p624 = pneg %p232
        %p625 = pneg %p229
        %p626 = pneg %p253
        %p627 = pneg %p250
        %p628 = pneg %p274
        %p629 = pneg %p271
        %p630 = pneg %p295
        %p631 = pneg %p292
        %p632 = pneg %p316
        %p633 = pneg %p313
        %p634 = pneg %p337
        %p635 = pneg %p334
        %p636 = pneg %p358
        %p637 = pneg %p355
        %p638 = pneg %p379
        %p639 = pneg %p376
        %s640 = smul.u32 4, %s38
        %s641 = smul.u32 64, %s38
        %p642 = scmp.eq.s32.totalorder %s38, 0
        // Predicated region
        $region109: #{tpu_custom_call.1} parent=75 // pred_check
          %p643 = pneg %p642
        $region110: #{tpu_custom_call.1} parent=75 // pred_check_branch
          %645 = sbr.rel (%p643) target = $region112
        $region111: #{tpu_custom_call.1} parent=75 // pred_region
          %646 = vst [vmem:[#allocation2] sm:$0xff] 0.0
          %647 = vst [vmem:[#allocation2 + $0x8] sm:$0xff] 0.0
        $region112: #{tpu_custom_call.1} parent=75 // pred_fallthru
          _
        %v648 = vld [vmem:[#allocation2] sm:$0xff]
        %v649 = vld [vmem:[#allocation2 + $0x8] sm:$0xff]
        %v650 = vld [vmem:[%s552] sm:$0xff]
        %v651 = vld [vmem:[%s552 + $0x8] sm:$0xff]
        %v652 = vld [vmem:[%s562] sm:$0xff]
        %v653 = vld [vmem:[%s562 + $0x8] sm:$0xff]
        %v654 = vld [vmem:[%s562 + $0x10] sm:$0xff]
        %v655 = vld [vmem:[%s562 + $0x18] sm:$0xff]
        %v656 = vld [vmem:[%s562 + $0x20] sm:$0xff]
        %v657 = vld [vmem:[%s562 + $0x28] sm:$0xff]
        %v658 = vld [vmem:[%s562 + $0x30] sm:$0xff]
        %v659 = vld [vmem:[%s562 + $0x38] sm:$0xff]
        %v660 = vld [vmem:[%s562 + $0x40] sm:$0xff]
        %v661 = vld [vmem:[%s562 + $0x48] sm:$0xff]
        %v662 = vld [vmem:[%s562 + $0x50] sm:$0xff]
        %v663 = vld [vmem:[%s562 + $0x58] sm:$0xff]
        %v664 = vld [vmem:[%s562 + $0x60] sm:$0xff]
        %v665 = vld [vmem:[%s562 + $0x68] sm:$0xff]
        %v666 = vld [vmem:[%s562 + $0x70] sm:$0xff]
        %v667 = vld [vmem:[%s562 + $0x78] sm:$0xff]
        %v668 = vld [vmem:[%s562 + $0x80] sm:$0xff]
        %v669 = vld [vmem:[%s562 + $0x88] sm:$0xff]
        %v670 = vld [vmem:[%s562 + $0x90] sm:$0xff]
        %v671 = vld [vmem:[%s562 + $0x98] sm:$0xff]
        %v672 = vld [vmem:[%s562 + $0xa0] sm:$0xff]
        %v673 = vld [vmem:[%s562 + $0xa8] sm:$0xff]
        %v674 = vld [vmem:[%s562 + $0xb0] sm:$0xff]
        %v675 = vld [vmem:[%s562 + $0xb8] sm:$0xff]
        %v676 = vld [vmem:[%s562 + $0xc0] sm:$0xff]
        %v677 = vld [vmem:[%s562 + $0xc8] sm:$0xff]
        %v678 = vld [vmem:[%s562 + $0xd0] sm:$0xff]
        %v679 = vld [vmem:[%s562 + $0xd8] sm:$0xff]
        %v680 = vld [vmem:[%s562 + $0xe0] sm:$0xff]
        %v681 = vld [vmem:[%s562 + $0xe8] sm:$0xff]
        %v682 = vld [vmem:[%s562 + $0xf0] sm:$0xff]
        %v683 = vld [vmem:[%s562 + $0xf8] sm:$0xff]
        %v684 = vld [vmem:[%s562 + $0x100] sm:$0xff]
        %v685 = vld [vmem:[%s562 + $0x108] sm:$0xff]
        %v686 = vld [vmem:[%s562 + $0x110] sm:$0xff]
        %v687 = vld [vmem:[%s562 + $0x118] sm:$0xff]
        %v688 = vld [vmem:[%s562 + $0x120] sm:$0xff]
        %v689 = vld [vmem:[%s562 + $0x128] sm:$0xff]
        %v690 = vld [vmem:[%s562 + $0x130] sm:$0xff]
        %v691 = vld [vmem:[%s562 + $0x138] sm:$0xff]
        %v692 = vld [vmem:[%s562 + $0x140] sm:$0xff]
        %v693 = vld [vmem:[%s562 + $0x148] sm:$0xff]
        %v694 = vld [vmem:[%s562 + $0x150] sm:$0xff]
        %v695 = vld [vmem:[%s562 + $0x158] sm:$0xff]
        %v696 = vld [vmem:[%s562 + $0x160] sm:$0xff]
        %v697 = vld [vmem:[%s562 + $0x168] sm:$0xff]
        %v698 = vld [vmem:[%s562 + $0x170] sm:$0xff]
        %v699 = vld [vmem:[%s562 + $0x178] sm:$0xff]
        %v700 = vld [vmem:[%s562 + $0x180] sm:$0xff]
        %v701 = vld [vmem:[%s562 + $0x188] sm:$0xff]
        %v702 = vld [vmem:[%s562 + $0x190] sm:$0xff]
        %v703 = vld [vmem:[%s562 + $0x198] sm:$0xff]
        %v704 = vld [vmem:[%s562 + $0x1a0] sm:$0xff]
        %v705 = vld [vmem:[%s562 + $0x1a8] sm:$0xff]
        %v706 = vld [vmem:[%s562 + $0x1b0] sm:$0xff]
        %v707 = vld [vmem:[%s562 + $0x1b8] sm:$0xff]
        %v708 = vld [vmem:[%s562 + $0x1c0] sm:$0xff]
        %v709 = vld [vmem:[%s562 + $0x1c8] sm:$0xff]
        %v710 = vld [vmem:[%s562 + $0x1d0] sm:$0xff]
        %v711 = vld [vmem:[%s562 + $0x1d8] sm:$0xff]
        %v712 = vld [vmem:[%s562 + $0x1e0] sm:$0xff]
        %v713 = vld [vmem:[%s562 + $0x1e8] sm:$0xff]
        %v714 = vld [vmem:[%s562 + $0x1f0] sm:$0xff]
        %v715 = vld [vmem:[%s562 + $0x1f8] sm:$0xff]
        %v718 = vunpack.c.l.b16 %v650
        %v719 = vunpack.c.h.b16 %v650
        %v720 = vunpack.c.l.b16 %v651
        %v721 = vunpack.c.h.b16 %v651
        %v722 = vpack.c.b16 %v718, %v718
        %v723 = vpack.c.b16 %v719, %v719
        %v724 = vpack.c.b16 %v720, %v720
        %v725 = vpack.c.b16 %v721, %v721
        %v794 = vunpack.c.l.b16 %v652
        %v795 = vunpack.c.h.b16 %v652
        %v796 = vunpack.c.l.b16 %v653
        %v797 = vunpack.c.h.b16 %v653
        %v798 = vunpack.c.l.b16 %v654
        %v799 = vunpack.c.h.b16 %v654
        %v800 = vunpack.c.l.b16 %v655
        %v801 = vunpack.c.h.b16 %v655
        %v802 = vunpack.c.l.b16 %v656
        %v803 = vunpack.c.h.b16 %v656
        %v804 = vunpack.c.l.b16 %v657
        %v805 = vunpack.c.h.b16 %v657
        %v806 = vunpack.c.l.b16 %v658
        %v807 = vunpack.c.h.b16 %v658
        %v808 = vunpack.c.l.b16 %v659
        %v809 = vunpack.c.h.b16 %v659
        %v810 = vunpack.c.l.b16 %v660
        %v811 = vunpack.c.h.b16 %v660
        %v812 = vunpack.c.l.b16 %v661
        %v813 = vunpack.c.h.b16 %v661
        %v814 = vunpack.c.l.b16 %v662
        %v815 = vunpack.c.h.b16 %v662
        %v816 = vunpack.c.l.b16 %v663
        %v817 = vunpack.c.h.b16 %v663
        %v818 = vunpack.c.l.b16 %v664
        %v819 = vunpack.c.h.b16 %v664
        %v820 = vunpack.c.l.b16 %v665
        %v821 = vunpack.c.h.b16 %v665
        %v822 = vunpack.c.l.b16 %v666
        %v823 = vunpack.c.h.b16 %v666
        %v824 = vunpack.c.l.b16 %v667
        %v825 = vunpack.c.h.b16 %v667
        %v826 = vunpack.c.l.b16 %v668
        %v827 = vunpack.c.h.b16 %v668
        %v828 = vunpack.c.l.b16 %v669
        %v829 = vunpack.c.h.b16 %v669
        %v830 = vunpack.c.l.b16 %v670
        %v831 = vunpack.c.h.b16 %v670
        %v832 = vunpack.c.l.b16 %v671
        %v833 = vunpack.c.h.b16 %v671
        %v834 = vunpack.c.l.b16 %v672
        %v835 = vunpack.c.h.b16 %v672
        %v836 = vunpack.c.l.b16 %v673
        %v837 = vunpack.c.h.b16 %v673
        %v838 = vunpack.c.l.b16 %v674
        %v839 = vunpack.c.h.b16 %v674
        %v840 = vunpack.c.l.b16 %v675
        %v841 = vunpack.c.h.b16 %v675
        %v842 = vunpack.c.l.b16 %v676
        %v843 = vunpack.c.h.b16 %v676
        %v844 = vunpack.c.l.b16 %v677
        %v845 = vunpack.c.h.b16 %v677
        %v846 = vunpack.c.l.b16 %v678
        %v847 = vunpack.c.h.b16 %v678
        %v848 = vunpack.c.l.b16 %v679
        %v849 = vunpack.c.h.b16 %v679
        %v850 = vunpack.c.l.b16 %v680
        %v851 = vunpack.c.h.b16 %v680
        %v852 = vunpack.c.l.b16 %v681
        %v853 = vunpack.c.h.b16 %v681
        %v854 = vunpack.c.l.b16 %v682
        %v855 = vunpack.c.h.b16 %v682
        %v856 = vunpack.c.l.b16 %v683
        %v857 = vunpack.c.h.b16 %v683
        %v858 = vunpack.c.l.b16 %v684
        %v859 = vunpack.c.h.b16 %v684
        %v860 = vunpack.c.l.b16 %v685
        %v861 = vunpack.c.h.b16 %v685
        %v862 = vunpack.c.l.b16 %v686
        %v863 = vunpack.c.h.b16 %v686
        %v864 = vunpack.c.l.b16 %v687
        %v865 = vunpack.c.h.b16 %v687
        %v866 = vunpack.c.l.b16 %v688
        %v867 = vunpack.c.h.b16 %v688
        %v868 = vunpack.c.l.b16 %v689
        %v869 = vunpack.c.h.b16 %v689
        %v870 = vunpack.c.l.b16 %v690
        %v871 = vunpack.c.h.b16 %v690
        %v872 = vunpack.c.l.b16 %v691
        %v873 = vunpack.c.h.b16 %v691
        %v874 = vunpack.c.l.b16 %v692
        %v875 = vunpack.c.h.b16 %v692
        %v876 = vunpack.c.l.b16 %v693
        %v877 = vunpack.c.h.b16 %v693
        %v878 = vunpack.c.l.b16 %v694
        %v879 = vunpack.c.h.b16 %v694
        %v880 = vunpack.c.l.b16 %v695
        %v881 = vunpack.c.h.b16 %v695
        %v882 = vunpack.c.l.b16 %v696
        %v883 = vunpack.c.h.b16 %v696
        %v884 = vunpack.c.l.b16 %v697
        %v885 = vunpack.c.h.b16 %v697
        %v886 = vunpack.c.l.b16 %v698
        %v887 = vunpack.c.h.b16 %v698
        %v888 = vunpack.c.l.b16 %v699
        %v889 = vunpack.c.h.b16 %v699
        %v890 = vunpack.c.l.b16 %v700
        %v891 = vunpack.c.h.b16 %v700
        %v892 = vunpack.c.l.b16 %v701
        %v893 = vunpack.c.h.b16 %v701
        %v894 = vunpack.c.l.b16 %v702
        %v895 = vunpack.c.h.b16 %v702
        %v896 = vunpack.c.l.b16 %v703
        %v897 = vunpack.c.h.b16 %v703
        %v898 = vunpack.c.l.b16 %v704
        %v899 = vunpack.c.h.b16 %v704
        %v900 = vunpack.c.l.b16 %v705
        %v901 = vunpack.c.h.b16 %v705
        %v902 = vunpack.c.l.b16 %v706
        %v903 = vunpack.c.h.b16 %v706
        %v904 = vunpack.c.l.b16 %v707
        %v905 = vunpack.c.h.b16 %v707
        %v906 = vunpack.c.l.b16 %v708
        %v907 = vunpack.c.h.b16 %v708
        %v908 = vunpack.c.l.b16 %v709
        %v909 = vunpack.c.h.b16 %v709
        %v910 = vunpack.c.l.b16 %v710
        %v911 = vunpack.c.h.b16 %v710
        %v912 = vunpack.c.l.b16 %v711
        %v913 = vunpack.c.h.b16 %v711
        %v914 = vunpack.c.l.b16 %v712
        %v915 = vunpack.c.h.b16 %v712
        %v916 = vunpack.c.l.b16 %v713
        %v917 = vunpack.c.h.b16 %v713
        %v918 = vunpack.c.l.b16 %v714
        %v919 = vunpack.c.h.b16 %v714
        %v920 = vunpack.c.l.b16 %v715
        %v921 = vunpack.c.h.b16 %v715
        %v922 = vpack.c.b16 %v796, %v794
        %v923 = vpack.c.b16 %v797, %v795
        %v924 = vpack.c.b16 %v800, %v798
        %v925 = vpack.c.b16 %v801, %v799
        %v926 = vpack.c.b16 %v804, %v802
        %v927 = vpack.c.b16 %v805, %v803
        %v928 = vpack.c.b16 %v808, %v806
        %v929 = vpack.c.b16 %v809, %v807
        %v930 = vpack.c.b16 %v812, %v810
        %v931 = vpack.c.b16 %v813, %v811
        %v932 = vpack.c.b16 %v816, %v814
        %v933 = vpack.c.b16 %v817, %v815
        %v934 = vpack.c.b16 %v820, %v818
        %v935 = vpack.c.b16 %v821, %v819
        %v936 = vpack.c.b16 %v824, %v822
        %v937 = vpack.c.b16 %v825, %v823
        %v938 = vpack.c.b16 %v828, %v826
        %v939 = vpack.c.b16 %v829, %v827
        %v940 = vpack.c.b16 %v832, %v830
        %v941 = vpack.c.b16 %v833, %v831
        %v942 = vpack.c.b16 %v836, %v834
        %v943 = vpack.c.b16 %v837, %v835
        %v944 = vpack.c.b16 %v840, %v838
        %v945 = vpack.c.b16 %v841, %v839
        %v946 = vpack.c.b16 %v844, %v842
        %v947 = vpack.c.b16 %v845, %v843
        %v948 = vpack.c.b16 %v848, %v846
        %v949 = vpack.c.b16 %v849, %v847
        %v950 = vpack.c.b16 %v852, %v850
        %v951 = vpack.c.b16 %v853, %v851
        %v952 = vpack.c.b16 %v856, %v854
        %v953 = vpack.c.b16 %v857, %v855
        %v954 = vpack.c.b16 %v860, %v858
        %v955 = vpack.c.b16 %v861, %v859
        %v956 = vpack.c.b16 %v864, %v862
        %v957 = vpack.c.b16 %v865, %v863
        %v958 = vpack.c.b16 %v868, %v866
        %v959 = vpack.c.b16 %v869, %v867
        %v960 = vpack.c.b16 %v872, %v870
        %v961 = vpack.c.b16 %v873, %v871
        %v962 = vpack.c.b16 %v876, %v874
        %v963 = vpack.c.b16 %v877, %v875
        %v964 = vpack.c.b16 %v880, %v878
        %v965 = vpack.c.b16 %v881, %v879
        %v966 = vpack.c.b16 %v884, %v882
        %v967 = vpack.c.b16 %v885, %v883
        %v968 = vpack.c.b16 %v888, %v886
        %v969 = vpack.c.b16 %v889, %v887
        %v970 = vpack.c.b16 %v892, %v890
        %v971 = vpack.c.b16 %v893, %v891
        %v972 = vpack.c.b16 %v896, %v894
        %v973 = vpack.c.b16 %v897, %v895
        %v974 = vpack.c.b16 %v900, %v898
        %v975 = vpack.c.b16 %v901, %v899
        %v976 = vpack.c.b16 %v904, %v902
        %v977 = vpack.c.b16 %v905, %v903
        %v978 = vpack.c.b16 %v908, %v906
        %v979 = vpack.c.b16 %v909, %v907
        %v980 = vpack.c.b16 %v912, %v910
        %v981 = vpack.c.b16 %v913, %v911
        %v982 = vpack.c.b16 %v916, %v914
        %v983 = vpack.c.b16 %v917, %v915
        %v984 = vpack.c.b16 %v920, %v918
        %v985 = vpack.c.b16 %v921, %v919
        %1050 = vmatpush.bf16.msra.mxu0 %v936
        %1051 = vmatpush.bf16.msra.mxu0 %v934
        %1052 = vmatpush.bf16.msra.mxu0 %v932
        %1053 = vmatpush.bf16.msra.mxu0 %v930
        %1054 = vmatpush.bf16.msra.mxu0 %v928
        %1055 = vmatpush.bf16.msra.mxu0 %v926
        %1056 = vmatpush.bf16.msra.mxu0 %v924
        %1057 = vmatpush.bf16.msra.mxu0 %v922
        %1058 = vmatmul.bf16.gmra.mxu0 %v722
        %v1059 = vpop.f32.mrf.mxu0
        %v1060 = vadd.f32 0.0, %v1059
        %v1061 = vpop.f32.mrf.mxu0
        %1062 = vdwg.mxu0
        %1063 = vmatpush.bf16.msra.mxu0 %v952
        %1064 = vmatpush.bf16.msra.mxu0 %v950
        %1065 = vmatpush.bf16.msra.mxu0 %v948
        %1066 = vmatpush.bf16.msra.mxu0 %v946
        %1067 = vmatpush.bf16.msra.mxu0 %v944
        %1068 = vmatpush.bf16.msra.mxu0 %v942
        %1069 = vmatpush.bf16.msra.mxu0 %v940
        %1070 = vmatpush.bf16.msra.mxu0 %v938
        %1071 = vmatmul.bf16.gmra.mxu0 %v723
        %v1072 = vpop.f32.mrf.mxu0
        %v1073 = vadd.f32 %v1060, %v1072
        %v1074 = vpop.f32.mrf.mxu0
        %1075 = vdwg.mxu0
        %1076 = vmatpush.bf16.msra.mxu0 %v968
        %1077 = vmatpush.bf16.msra.mxu0 %v966
        %1078 = vmatpush.bf16.msra.mxu0 %v964
        %1079 = vmatpush.bf16.msra.mxu0 %v962
        %1080 = vmatpush.bf16.msra.mxu0 %v960
        %1081 = vmatpush.bf16.msra.mxu0 %v958
        %1082 = vmatpush.bf16.msra.mxu0 %v956
        %1083 = vmatpush.bf16.msra.mxu0 %v954
        %1084 = vmatmul.bf16.gmra.mxu0 %v724
        %v1085 = vpop.f32.mrf.mxu0
        %v1086 = vadd.f32 %v1073, %v1085
        %v1087 = vpop.f32.mrf.mxu0
        %1088 = vdwg.mxu0
        %1089 = vmatpush.bf16.msra.mxu0 %v984
        %1090 = vmatpush.bf16.msra.mxu0 %v982
        %1091 = vmatpush.bf16.msra.mxu0 %v980
        %1092 = vmatpush.bf16.msra.mxu0 %v978
        %1093 = vmatpush.bf16.msra.mxu0 %v976
        %1094 = vmatpush.bf16.msra.mxu0 %v974
        %1095 = vmatpush.bf16.msra.mxu0 %v972
        %1096 = vmatpush.bf16.msra.mxu0 %v970
        %1097 = vmatmul.bf16.gmra.mxu0 %v725
        %v1098 = vpop.f32.mrf.mxu0
        %v1099 = vadd.f32 %v1086, %v1098
        %v1100 = vpop.f32.mrf.mxu0
        %1101 = vdwg.mxu0
        %1102 = vmatpush.bf16.msra.mxu0 %v937
        %1103 = vmatpush.bf16.msra.mxu0 %v935
        %1104 = vmatpush.bf16.msra.mxu0 %v933
        %1105 = vmatpush.bf16.msra.mxu0 %v931
        %1106 = vmatpush.bf16.msra.mxu0 %v929
        %1107 = vmatpush.bf16.msra.mxu0 %v927
        %1108 = vmatpush.bf16.msra.mxu0 %v925
        %1109 = vmatpush.bf16.msra.mxu0 %v923
        %1110 = vmatmul.bf16.gmra.mxu0 %v722
        %v1111 = vpop.f32.mrf.mxu0
        %v1112 = vadd.f32 0.0, %v1111
        %v1113 = vpop.f32.mrf.mxu0
        %1114 = vdwg.mxu0
        %1115 = vmatpush.bf16.msra.mxu0 %v953
        %1116 = vmatpush.bf16.msra.mxu0 %v951
        %1117 = vmatpush.bf16.msra.mxu0 %v949
        %1118 = vmatpush.bf16.msra.mxu0 %v947
        %1119 = vmatpush.bf16.msra.mxu0 %v945
        %1120 = vmatpush.bf16.msra.mxu0 %v943
        %1121 = vmatpush.bf16.msra.mxu0 %v941
        %1122 = vmatpush.bf16.msra.mxu0 %v939
        %1123 = vmatmul.bf16.gmra.mxu0 %v723
        %v1124 = vpop.f32.mrf.mxu0
        %v1125 = vadd.f32 %v1112, %v1124
        %v1126 = vpop.f32.mrf.mxu0
        %1127 = vdwg.mxu0
        %1128 = vmatpush.bf16.msra.mxu0 %v969
        %1129 = vmatpush.bf16.msra.mxu0 %v967
        %1130 = vmatpush.bf16.msra.mxu0 %v965
        %1131 = vmatpush.bf16.msra.mxu0 %v963
        %1132 = vmatpush.bf16.msra.mxu0 %v961
        %1133 = vmatpush.bf16.msra.mxu0 %v959
        %1134 = vmatpush.bf16.msra.mxu0 %v957
        %1135 = vmatpush.bf16.msra.mxu0 %v955
        %1136 = vmatmul.bf16.gmra.mxu0 %v724
        %v1137 = vpop.f32.mrf.mxu0
        %v1138 = vadd.f32 %v1125, %v1137
        %v1139 = vpop.f32.mrf.mxu0
        %1140 = vdwg.mxu0
        %1141 = vmatpush.bf16.msra.mxu0 %v985
        %1142 = vmatpush.bf16.msra.mxu0 %v983
        %1143 = vmatpush.bf16.msra.mxu0 %v981
        %1144 = vmatpush.bf16.msra.mxu0 %v979
        %1145 = vmatpush.bf16.msra.mxu0 %v977
        %1146 = vmatpush.bf16.msra.mxu0 %v975
        %1147 = vmatpush.bf16.msra.mxu0 %v973
        %1148 = vmatpush.bf16.msra.mxu0 %v971
        %1149 = vmatmul.bf16.gmra.mxu0 %v725
        %v1150 = vpop.f32.mrf.mxu0
        %v1151 = vadd.f32 %v1138, %v1150
        %v1152 = vpop.f32.mrf.mxu0
        %1153 = vdwg.mxu0
        %v1154 = vadd.f32 %v648, %v1099
        %v1155 = vadd.f32 %v649, %v1151
        %1156 = vst [vmem:[#allocation2] sm:$0xff] %v1154
        %1157 = vst [vmem:[#allocation2 + $0x8] sm:$0xff] %v1155
        %p1158 = scmp.eq.s32.totalorder %s38, 1
        // Predicated region
        $region113: #{tpu_custom_call.1} parent=75 // pred_check
          %p1159 = pneg %p1158
        $region114: #{tpu_custom_call.1} parent=75 // pred_check_branch
          %1161 = sbr.rel (%p1159) target = $region116
        $region115: #{tpu_custom_call.1} parent=75 // pred_region
          %v1162 = vld [vmem:[#allocation2] sm:$0xff]
          %v1163 = vld [vmem:[#allocation2 + $0x8] sm:$0xff]
          %v1164 = vpack.c.bf16 %v1162, %v1162
          %v1165 = vpack.c.bf16 %v1163, %v1163
          %v1166 = vld [vmem:[#allocation8] sm:$0xff]
          %v1167 = vld [vmem:[#allocation8 + $0x8] sm:$0xff]
          %v1168 = vld [vmem:[#allocation8 + $0x10] sm:$0xff]
          %v1169 = vld [vmem:[#allocation8 + $0x18] sm:$0xff]
          %v1170 = vld [vmem:[#allocation8 + $0x20] sm:$0xff]
          %v1171 = vld [vmem:[#allocation8 + $0x28] sm:$0xff]
          %v1172 = vld [vmem:[#allocation8 + $0x30] sm:$0xff]
          %v1173 = vld [vmem:[#allocation8 + $0x38] sm:$0xff]
          %v1174 = vld [vmem:[#allocation8 + $0x40] sm:$0xff]
          %v1175 = vld [vmem:[#allocation8 + $0x48] sm:$0xff]
          %v1176 = vld [vmem:[#allocation8 + $0x50] sm:$0xff]
          %v1177 = vld [vmem:[#allocation8 + $0x58] sm:$0xff]
          %v1178 = vld [vmem:[#allocation8 + $0x60] sm:$0xff]
          %v1179 = vld [vmem:[#allocation8 + $0x68] sm:$0xff]
          %v1180 = vld [vmem:[#allocation8 + $0x70] sm:$0xff]
          %v1181 = vld [vmem:[#allocation8 + $0x78] sm:$0xff]
          %v1182 = vld [vmem:[#allocation8 + $0x80] sm:$0xff]
          %v1183 = vld [vmem:[#allocation8 + $0x88] sm:$0xff]
          %v1184 = vld [vmem:[#allocation8 + $0x90] sm:$0xff]
          %v1185 = vld [vmem:[#allocation8 + $0x98] sm:$0xff]
          %v1186 = vld [vmem:[#allocation8 + $0xa0] sm:$0xff]
          %v1187 = vld [vmem:[#allocation8 + $0xa8] sm:$0xff]
          %v1188 = vld [vmem:[#allocation8 + $0xb0] sm:$0xff]
          %v1189 = vld [vmem:[#allocation8 + $0xb8] sm:$0xff]
          %v1190 = vld [vmem:[#allocation8 + $0xc0] sm:$0xff]
          %v1191 = vld [vmem:[#allocation8 + $0xc8] sm:$0xff]
          %v1192 = vld [vmem:[#allocation8 + $0xd0] sm:$0xff]
          %v1193 = vld [vmem:[#allocation8 + $0xd8] sm:$0xff]
          %v1194 = vld [vmem:[#allocation8 + $0xe0] sm:$0xff]
          %v1195 = vld [vmem:[#allocation8 + $0xe8] sm:$0xff]
          %v1196 = vld [vmem:[#allocation8 + $0xf0] sm:$0xff]
          %v1197 = vld [vmem:[#allocation8 + $0xf8] sm:$0xff]
          %v1230 = vunpack.c.l.b16 %v1166
          %v1231 = vunpack.c.h.b16 %v1166
          %v1232 = vunpack.c.l.b16 %v1167
          %v1233 = vunpack.c.h.b16 %v1167
          %v1234 = vunpack.c.l.b16 %v1168
          %v1235 = vunpack.c.h.b16 %v1168
          %v1236 = vunpack.c.l.b16 %v1169
          %v1237 = vunpack.c.h.b16 %v1169
          %v1238 = vunpack.c.l.b16 %v1170
          %v1239 = vunpack.c.h.b16 %v1170
          %v1240 = vunpack.c.l.b16 %v1171
          %v1241 = vunpack.c.h.b16 %v1171
          %v1242 = vunpack.c.l.b16 %v1172
          %v1243 = vunpack.c.h.b16 %v1172
          %v1244 = vunpack.c.l.b16 %v1173
          %v1245 = vunpack.c.h.b16 %v1173
          %v1246 = vunpack.c.l.b16 %v1174
          %v1247 = vunpack.c.h.b16 %v1174
          %v1248 = vunpack.c.l.b16 %v1175
          %v1249 = vunpack.c.h.b16 %v1175
          %v1250 = vunpack.c.l.b16 %v1176
          %v1251 = vunpack.c.h.b16 %v1176
          %v1252 = vunpack.c.l.b16 %v1177
          %v1253 = vunpack.c.h.b16 %v1177
          %v1254 = vunpack.c.l.b16 %v1178
          %v1255 = vunpack.c.h.b16 %v1178
          %v1256 = vunpack.c.l.b16 %v1179
          %v1257 = vunpack.c.h.b16 %v1179
          %v1258 = vunpack.c.l.b16 %v1180
          %v1259 = vunpack.c.h.b16 %v1180
          %v1260 = vunpack.c.l.b16 %v1181
          %v1261 = vunpack.c.h.b16 %v1181
          %v1262 = vunpack.c.l.b16 %v1182
          %v1263 = vunpack.c.h.b16 %v1182
          %v1264 = vunpack.c.l.b16 %v1183
          %v1265 = vunpack.c.h.b16 %v1183
          %v1266 = vunpack.c.l.b16 %v1184
          %v1267 = vunpack.c.h.b16 %v1184
          %v1268 = vunpack.c.l.b16 %v1185
          %v1269 = vunpack.c.h.b16 %v1185
          %v1270 = vunpack.c.l.b16 %v1186
          %v1271 = vunpack.c.h.b16 %v1186
          %v1272 = vunpack.c.l.b16 %v1187
          %v1273 = vunpack.c.h.b16 %v1187
          %v1274 = vunpack.c.l.b16 %v1188
          %v1275 = vunpack.c.h.b16 %v1188
          %v1276 = vunpack.c.l.b16 %v1189
          %v1277 = vunpack.c.h.b16 %v1189
          %v1278 = vunpack.c.l.b16 %v1190
          %v1279 = vunpack.c.h.b16 %v1190
          %v1280 = vunpack.c.l.b16 %v1191
          %v1281 = vunpack.c.h.b16 %v1191
          %v1282 = vunpack.c.l.b16 %v1192
          %v1283 = vunpack.c.h.b16 %v1192
          %v1284 = vunpack.c.l.b16 %v1193
          %v1285 = vunpack.c.h.b16 %v1193
          %v1286 = vunpack.c.l.b16 %v1194
          %v1287 = vunpack.c.h.b16 %v1194
          %v1288 = vunpack.c.l.b16 %v1195
          %v1289 = vunpack.c.h.b16 %v1195
          %v1290 = vunpack.c.l.b16 %v1196
          %v1291 = vunpack.c.h.b16 %v1196
          %v1292 = vunpack.c.l.b16 %v1197
          %v1293 = vunpack.c.h.b16 %v1197
          %v1294 = vpack.c.b16 %v1232, %v1230
          %v1295 = vpack.c.b16 %v1233, %v1231
          %v1296 = vpack.c.b16 %v1236, %v1234
          %v1297 = vpack.c.b16 %v1237, %v1235
          %v1298 = vpack.c.b16 %v1240, %v1238
          %v1299 = vpack.c.b16 %v1241, %v1239
          %v1300 = vpack.c.b16 %v1244, %v1242
          %v1301 = vpack.c.b16 %v1245, %v1243
          %v1302 = vpack.c.b16 %v1248, %v1246
          %v1303 = vpack.c.b16 %v1249, %v1247
          %v1304 = vpack.c.b16 %v1252, %v1250
          %v1305 = vpack.c.b16 %v1253, %v1251
          %v1306 = vpack.c.b16 %v1256, %v1254
          %v1307 = vpack.c.b16 %v1257, %v1255
          %v1308 = vpack.c.b16 %v1260, %v1258
          %v1309 = vpack.c.b16 %v1261, %v1259
          %v1310 = vpack.c.b16 %v1264, %v1262
          %v1311 = vpack.c.b16 %v1265, %v1263
          %v1312 = vpack.c.b16 %v1268, %v1266
          %v1313 = vpack.c.b16 %v1269, %v1267
          %v1314 = vpack.c.b16 %v1272, %v1270
          %v1315 = vpack.c.b16 %v1273, %v1271
          %v1316 = vpack.c.b16 %v1276, %v1274
          %v1317 = vpack.c.b16 %v1277, %v1275
          %v1318 = vpack.c.b16 %v1280, %v1278
          %v1319 = vpack.c.b16 %v1281, %v1279
          %v1320 = vpack.c.b16 %v1284, %v1282
          %v1321 = vpack.c.b16 %v1285, %v1283
          %v1322 = vpack.c.b16 %v1288, %v1286
          %v1323 = vpack.c.b16 %v1289, %v1287
          %v1324 = vpack.c.b16 %v1292, %v1290
          %v1325 = vpack.c.b16 %v1293, %v1291
          %1358 = vmatpush.bf16.msra.mxu0 %v1308
          %1359 = vmatpush.bf16.msra.mxu0 %v1306
          %1360 = vmatpush.bf16.msra.mxu0 %v1304
          %1361 = vmatpush.bf16.msra.mxu0 %v1302
          %1362 = vmatpush.bf16.msra.mxu0 %v1300
          %1363 = vmatpush.bf16.msra.mxu0 %v1298
          %1364 = vmatpush.bf16.msra.mxu0 %v1296
          %1365 = vmatpush.bf16.msra.mxu0 %v1294
          %1366 = vmatmul.bf16.gmra.mxu0 %v1164
          %v1367 = vpop.f32.mrf.mxu0
          %v1368 = vadd.f32 0.0, %v1367
          %v1369 = vpop.f32.mrf.mxu0
          %1370 = vdwg.mxu0
          %1371 = vmatpush.bf16.msra.mxu0 %v1324
          %1372 = vmatpush.bf16.msra.mxu0 %v1322
          %1373 = vmatpush.bf16.msra.mxu0 %v1320
          %1374 = vmatpush.bf16.msra.mxu0 %v1318
          %1375 = vmatpush.bf16.msra.mxu0 %v1316
          %1376 = vmatpush.bf16.msra.mxu0 %v1314
          %1377 = vmatpush.bf16.msra.mxu0 %v1312
          %1378 = vmatpush.bf16.msra.mxu0 %v1310
          %1379 = vmatmul.bf16.gmra.mxu0 %v1165
          %v1380 = vpop.f32.mrf.mxu0
          %v1381 = vadd.f32 %v1368, %v1380
          %v1382 = vpop.f32.mrf.mxu0
          %1383 = vdwg.mxu0
          %1384 = vmatpush.bf16.msra.mxu0 %v1309
          %1385 = vmatpush.bf16.msra.mxu0 %v1307
          %1386 = vmatpush.bf16.msra.mxu0 %v1305
          %1387 = vmatpush.bf16.msra.mxu0 %v1303
          %1388 = vmatpush.bf16.msra.mxu0 %v1301
          %1389 = vmatpush.bf16.msra.mxu0 %v1299
          %1390 = vmatpush.bf16.msra.mxu0 %v1297
          %1391 = vmatpush.bf16.msra.mxu0 %v1295
          %1392 = vmatmul.bf16.gmra.mxu0 %v1164
          %v1393 = vpop.f32.mrf.mxu0
          %v1394 = vadd.f32 0.0, %v1393
          %v1395 = vpop.f32.mrf.mxu0
          %1396 = vdwg.mxu0
          %1397 = vmatpush.bf16.msra.mxu0 %v1325
          %1398 = vmatpush.bf16.msra.mxu0 %v1323
          %1399 = vmatpush.bf16.msra.mxu0 %v1321
          %1400 = vmatpush.bf16.msra.mxu0 %v1319
          %1401 = vmatpush.bf16.msra.mxu0 %v1317
          %1402 = vmatpush.bf16.msra.mxu0 %v1315
          %1403 = vmatpush.bf16.msra.mxu0 %v1313
          %1404 = vmatpush.bf16.msra.mxu0 %v1311
          %1405 = vmatmul.bf16.gmra.mxu0 %v1165
          %v1406 = vpop.f32.mrf.mxu0
          %v1407 = vadd.f32 %v1394, %v1406
          %v1408 = vpop.f32.mrf.mxu0
          %1409 = vdwg.mxu0
          %v1410 = vld [vmem:[%s3] sm:$0x3]
          %v1411 = vld [vmem:[#allocation9] sm:$0x3]
          %v1412 = vrot.slane %v1381, 4
          %v1413 = vadd.f32 %v1381, %v1412
          %v1414 = vrot.slane %v1413, 2
          %v1415 = vadd.f32 %v1413, %v1414
          %v1416 = vrot.slane %v1415, 1
          %v1417 = vadd.f32 %v1415, %v1416
          %v1418 = vrot.slane %v1407, 4
          %v1419 = vadd.f32 %v1407, %v1418
          %v1420 = vrot.slane %v1419, 2
          %v1421 = vadd.f32 %v1419, %v1420
          %v1422 = vrot.slane %v1421, 1
          %v1423 = vadd.f32 %v1421, %v1422
          %v1424 = vmul.f32 %v1417, 0.125
          %v1425 = vmul.f32 %v1423, 0.125
          %v1426 = vmul.f32 %v1381, %v1381
          %v1427 = vmul.f32 %v1407, %v1407
          %v1428 = vrot.slane %v1426, 4
          %v1429 = vadd.f32 %v1426, %v1428
          %v1430 = vrot.slane %v1429, 2
          %v1431 = vadd.f32 %v1429, %v1430
          %v1432 = vrot.slane %v1431, 1
          %v1433 = vadd.f32 %v1431, %v1432
          %v1434 = vrot.slane %v1427, 4
          %v1435 = vadd.f32 %v1427, %v1434
          %v1436 = vrot.slane %v1435, 2
          %v1437 = vadd.f32 %v1435, %v1436
          %v1438 = vrot.slane %v1437, 1
          %v1439 = vadd.f32 %v1437, %v1438
          %v1440 = vmul.f32 %v1433, 0.125
          %v1441 = vmul.f32 %v1439, 0.125
          %v1442 = vmul.f32 %v1424, %v1424
          %v1443 = vmul.f32 %v1425, %v1425
          %v1444 = vsub.f32 %v1440, %v1442
          %v1445 = vsub.f32 %v1441, %v1443
          %v1446 = vmax.f32 %v1444, 0.0
          %v1447 = vmax.f32 %v1445, 0.0
          %v1448 = vsub.f32 %v1381, %v1424
          %v1449 = vsub.f32 %v1407, %v1425
          %v1450 = vadd.f32 %v1446, 1e-05
          %v1451 = vadd.f32 %v1447, 1e-05
          %v1452 = vrsqrt.pop %v1450
          %v1453 = vmul.f32 %v1452, %v1450
          %v1454 = vmul.f32 %v1453, %v1452
          %v1455 = vmul.f32 0.5, %v1454
          %v1456 = vsub.f32 1.5, %v1455
          %v1457 = vmul.f32 %v1452, %v1456
          %vm1458 = vweird.f32 %v1450
          %vm1459 = vweird.f32 %v1452
          %vm1460 = vmor %vm1458, %vm1459
          %v1461 = vsel %vm1460, %v1452, %v1457
          %v1462 = vrsqrt.pop %v1451
          %v1463 = vmul.f32 %v1462, %v1451
          %v1464 = vmul.f32 %v1463, %v1462
          %v1465 = vmul.f32 0.5, %v1464
          %v1466 = vsub.f32 1.5, %v1465
          %v1467 = vmul.f32 %v1462, %v1466
          %vm1468 = vweird.f32 %v1451
          %vm1469 = vweird.f32 %v1462
          %vm1470 = vmor %vm1468, %vm1469
          %v1471 = vsel %vm1470, %v1462, %v1467
          %v1472 = vmul.f32 %v1448, %v1461
          %v1473 = vmul.f32 %v1449, %v1471
          %v1475 = vperm.slane %v1410, 0
          %v1476 = vperm.slane %v1410, 1
          %v1479 = vmul.f32 %v1472, %v1475
          %v1480 = vmul.f32 %v1473, %v1476
          %v1482 = vperm.slane %v1411, 0
          %v1483 = vperm.slane %v1411, 1
          %v1486 = vadd.f32 %v1479, %v1482
          %v1487 = vadd.f32 %v1480, %v1483
          %v1488 = vmax.f32 %v1486, 0.0
          %v1489 = vmax.f32 %v1487, 0.0
          %v1490 = vpack.c.bf16 %v1488, %v1488
          %v1491 = vpack.c.bf16 %v1489, %v1489
          %v1492 = vld [vmem:[#allocation11] sm:$0xff]
          %v1493 = vld [vmem:[#allocation11 + $0x8] sm:$0xff]
          %v1494 = vld [vmem:[#allocation11 + $0x10] sm:$0xff]
          %v1495 = vld [vmem:[#allocation11 + $0x18] sm:$0xff]
          %v1496 = vld [vmem:[#allocation11 + $0x20] sm:$0xff]
          %v1497 = vld [vmem:[#allocation11 + $0x28] sm:$0xff]
          %v1498 = vld [vmem:[#allocation11 + $0x30] sm:$0xff]
          %v1499 = vld [vmem:[#allocation11 + $0x38] sm:$0xff]
          %v1500 = vld [vmem:[#allocation11 + $0x40] sm:$0xff]
          %v1501 = vld [vmem:[#allocation11 + $0x48] sm:$0xff]
          %v1502 = vld [vmem:[#allocation11 + $0x50] sm:$0xff]
          %v1503 = vld [vmem:[#allocation11 + $0x58] sm:$0xff]
          %v1504 = vld [vmem:[#allocation11 + $0x60] sm:$0xff]
          %v1505 = vld [vmem:[#allocation11 + $0x68] sm:$0xff]
          %v1506 = vld [vmem:[#allocation11 + $0x70] sm:$0xff]
          %v1507 = vld [vmem:[#allocation11 + $0x78] sm:$0xff]
          %v1508 = vld [vmem:[#allocation11 + $0x80] sm:$0xff]
          %v1509 = vld [vmem:[#allocation11 + $0x88] sm:$0xff]
          %v1510 = vld [vmem:[#allocation11 + $0x90] sm:$0xff]
          %v1511 = vld [vmem:[#allocation11 + $0x98] sm:$0xff]
          %v1512 = vld [vmem:[#allocation11 + $0xa0] sm:$0xff]
          %v1513 = vld [vmem:[#allocation11 + $0xa8] sm:$0xff]
          %v1514 = vld [vmem:[#allocation11 + $0xb0] sm:$0xff]
          %v1515 = vld [vmem:[#allocation11 + $0xb8] sm:$0xff]
          %v1516 = vld [vmem:[#allocation11 + $0xc0] sm:$0xff]
          %v1517 = vld [vmem:[#allocation11 + $0xc8] sm:$0xff]
          %v1518 = vld [vmem:[#allocation11 + $0xd0] sm:$0xff]
          %v1519 = vld [vmem:[#allocation11 + $0xd8] sm:$0xff]
          %v1520 = vld [vmem:[#allocation11 + $0xe0] sm:$0xff]
          %v1521 = vld [vmem:[#allocation11 + $0xe8] sm:$0xff]
          %v1522 = vld [vmem:[#allocation11 + $0xf0] sm:$0xff]
          %v1523 = vld [vmem:[#allocation11 + $0xf8] sm:$0xff]
          %v1556 = vunpack.c.l.b16 %v1492
          %v1557 = vunpack.c.h.b16 %v1492
          %v1558 = vunpack.c.l.b16 %v1493
          %v1559 = vunpack.c.h.b16 %v1493
          %v1560 = vunpack.c.l.b16 %v1494
          %v1561 = vunpack.c.h.b16 %v1494
          %v1562 = vunpack.c.l.b16 %v1495
          %v1563 = vunpack.c.h.b16 %v1495
          %v1564 = vunpack.c.l.b16 %v1496
          %v1565 = vunpack.c.h.b16 %v1496
          %v1566 = vunpack.c.l.b16 %v1497
          %v1567 = vunpack.c.h.b16 %v1497
          %v1568 = vunpack.c.l.b16 %v1498
          %v1569 = vunpack.c.h.b16 %v1498
          %v1570 = vunpack.c.l.b16 %v1499
          %v1571 = vunpack.c.h.b16 %v1499
          %v1572 = vunpack.c.l.b16 %v1500
          %v1573 = vunpack.c.h.b16 %v1500
          %v1574 = vunpack.c.l.b16 %v1501
          %v1575 = vunpack.c.h.b16 %v1501
          %v1576 = vunpack.c.l.b16 %v1502
          %v1577 = vunpack.c.h.b16 %v1502
          %v1578 = vunpack.c.l.b16 %v1503
          %v1579 = vunpack.c.h.b16 %v1503
          %v1580 = vunpack.c.l.b16 %v1504
          %v1581 = vunpack.c.h.b16 %v1504
          %v1582 = vunpack.c.l.b16 %v1505
          %v1583 = vunpack.c.h.b16 %v1505
          %v1584 = vunpack.c.l.b16 %v1506
          %v1585 = vunpack.c.h.b16 %v1506
          %v1586 = vunpack.c.l.b16 %v1507
          %v1587 = vunpack.c.h.b16 %v1507
          %v1588 = vunpack.c.l.b16 %v1508
          %v1589 = vunpack.c.h.b16 %v1508
          %v1590 = vunpack.c.l.b16 %v1509
          %v1591 = vunpack.c.h.b16 %v1509
          %v1592 = vunpack.c.l.b16 %v1510
          %v1593 = vunpack.c.h.b16 %v1510
          %v1594 = vunpack.c.l.b16 %v1511
          %v1595 = vunpack.c.h.b16 %v1511
          %v1596 = vunpack.c.l.b16 %v1512
          %v1597 = vunpack.c.h.b16 %v1512
          %v1598 = vunpack.c.l.b16 %v1513
          %v1599 = vunpack.c.h.b16 %v1513
          %v1600 = vunpack.c.l.b16 %v1514
          %v1601 = vunpack.c.h.b16 %v1514
          %v1602 = vunpack.c.l.b16 %v1515
          %v1603 = vunpack.c.h.b16 %v1515
          %v1604 = vunpack.c.l.b16 %v1516
          %v1605 = vunpack.c.h.b16 %v1516
          %v1606 = vunpack.c.l.b16 %v1517
          %v1607 = vunpack.c.h.b16 %v1517
          %v1608 = vunpack.c.l.b16 %v1518
          %v1609 = vunpack.c.h.b16 %v1518
          %v1610 = vunpack.c.l.b16 %v1519
          %v1611 = vunpack.c.h.b16 %v1519
          %v1612 = vunpack.c.l.b16 %v1520
          %v1613 = vunpack.c.h.b16 %v1520
          %v1614 = vunpack.c.l.b16 %v1521
          %v1615 = vunpack.c.h.b16 %v1521
          %v1616 = vunpack.c.l.b16 %v1522
          %v1617 = vunpack.c.h.b16 %v1522
          %v1618 = vunpack.c.l.b16 %v1523
          %v1619 = vunpack.c.h.b16 %v1523
          %v1620 = vpack.c.b16 %v1558, %v1556
          %v1621 = vpack.c.b16 %v1559, %v1557
          %v1622 = vpack.c.b16 %v1562, %v1560
          %v1623 = vpack.c.b16 %v1563, %v1561
          %v1624 = vpack.c.b16 %v1566, %v1564
          %v1625 = vpack.c.b16 %v1567, %v1565
          %v1626 = vpack.c.b16 %v1570, %v1568
          %v1627 = vpack.c.b16 %v1571, %v1569
          %v1628 = vpack.c.b16 %v1574, %v1572
          %v1629 = vpack.c.b16 %v1575, %v1573
          %v1630 = vpack.c.b16 %v1578, %v1576
          %v1631 = vpack.c.b16 %v1579, %v1577
          %v1632 = vpack.c.b16 %v1582, %v1580
          %v1633 = vpack.c.b16 %v1583, %v1581
          %v1634 = vpack.c.b16 %v1586, %v1584
          %v1635 = vpack.c.b16 %v1587, %v1585
          %v1636 = vpack.c.b16 %v1590, %v1588
          %v1637 = vpack.c.b16 %v1591, %v1589
          %v1638 = vpack.c.b16 %v1594, %v1592
          %v1639 = vpack.c.b16 %v1595, %v1593
          %v1640 = vpack.c.b16 %v1598, %v1596
          %v1641 = vpack.c.b16 %v1599, %v1597
          %v1642 = vpack.c.b16 %v1602, %v1600
          %v1643 = vpack.c.b16 %v1603, %v1601
          %v1644 = vpack.c.b16 %v1606, %v1604
          %v1645 = vpack.c.b16 %v1607, %v1605
          %v1646 = vpack.c.b16 %v1610, %v1608
          %v1647 = vpack.c.b16 %v1611, %v1609
          %v1648 = vpack.c.b16 %v1614, %v1612
          %v1649 = vpack.c.b16 %v1615, %v1613
          %v1650 = vpack.c.b16 %v1618, %v1616
          %v1651 = vpack.c.b16 %v1619, %v1617
          %1684 = vmatpush.bf16.msra.mxu0 %v1634
          %1685 = vmatpush.bf16.msra.mxu0 %v1632
          %1686 = vmatpush.bf16.msra.mxu0 %v1630
          %1687 = vmatpush.bf16.msra.mxu0 %v1628
          %1688 = vmatpush.bf16.msra.mxu0 %v1626
          %1689 = vmatpush.bf16.msra.mxu0 %v1624
          %1690 = vmatpush.bf16.msra.mxu0 %v1622
          %1691 = vmatpush.bf16.msra.mxu0 %v1620
          %1692 = vmatmul.bf16.gmra.mxu0 %v1490
          %v1693 = vpop.f32.mrf.mxu0
          %v1694 = vadd.f32 0.0, %v1693
          %v1695 = vpop.f32.mrf.mxu0
          %1696 = vdwg.mxu0
          %1697 = vmatpush.bf16.msra.mxu0 %v1650
          %1698 = vmatpush.bf16.msra.mxu0 %v1648
          %1699 = vmatpush.bf16.msra.mxu0 %v1646
          %1700 = vmatpush.bf16.msra.mxu0 %v1644
          %1701 = vmatpush.bf16.msra.mxu0 %v1642
          %1702 = vmatpush.bf16.msra.mxu0 %v1640
          %1703 = vmatpush.bf16.msra.mxu0 %v1638
          %1704 = vmatpush.bf16.msra.mxu0 %v1636
          %1705 = vmatmul.bf16.gmra.mxu0 %v1491
          %v1706 = vpop.f32.mrf.mxu0
          %v1707 = vadd.f32 %v1694, %v1706
          %v1708 = vpop.f32.mrf.mxu0
          %1709 = vdwg.mxu0
          %1710 = vmatpush.bf16.msra.mxu0 %v1635
          %1711 = vmatpush.bf16.msra.mxu0 %v1633
          %1712 = vmatpush.bf16.msra.mxu0 %v1631
          %1713 = vmatpush.bf16.msra.mxu0 %v1629
          %1714 = vmatpush.bf16.msra.mxu0 %v1627
          %1715 = vmatpush.bf16.msra.mxu0 %v1625
          %1716 = vmatpush.bf16.msra.mxu0 %v1623
          %1717 = vmatpush.bf16.msra.mxu0 %v1621
          %1718 = vmatmul.bf16.gmra.mxu0 %v1490
          %v1719 = vpop.f32.mrf.mxu0
          %v1720 = vadd.f32 0.0, %v1719
          %v1721 = vpop.f32.mrf.mxu0
          %1722 = vdwg.mxu0
          %1723 = vmatpush.bf16.msra.mxu0 %v1651
          %1724 = vmatpush.bf16.msra.mxu0 %v1649
          %1725 = vmatpush.bf16.msra.mxu0 %v1647
          %1726 = vmatpush.bf16.msra.mxu0 %v1645
          %1727 = vmatpush.bf16.msra.mxu0 %v1643
          %1728 = vmatpush.bf16.msra.mxu0 %v1641
          %1729 = vmatpush.bf16.msra.mxu0 %v1639
          %1730 = vmatpush.bf16.msra.mxu0 %v1637
          %1731 = vmatmul.bf16.gmra.mxu0 %v1491
          %v1732 = vpop.f32.mrf.mxu0
          %v1733 = vadd.f32 %v1720, %v1732
          %v1734 = vpop.f32.mrf.mxu0
          %1735 = vdwg.mxu0
          %v1736 = vld [vmem:[%s6] sm:$0x3]
          %v1737 = vld [vmem:[%s7] sm:$0x3]
          %v1738 = vrot.slane %v1707, 4
          %v1739 = vadd.f32 %v1707, %v1738
          %v1740 = vrot.slane %v1739, 2
          %v1741 = vadd.f32 %v1739, %v1740
          %v1742 = vrot.slane %v1741, 1
          %v1743 = vadd.f32 %v1741, %v1742
          %v1744 = vrot.slane %v1733, 4
          %v1745 = vadd.f32 %v1733, %v1744
          %v1746 = vrot.slane %v1745, 2
          %v1747 = vadd.f32 %v1745, %v1746
          %v1748 = vrot.slane %v1747, 1
          %v1749 = vadd.f32 %v1747, %v1748
          %v1750 = vmul.f32 %v1743, 0.125
          %v1751 = vmul.f32 %v1749, 0.125
          %v1752 = vmul.f32 %v1707, %v1707
          %v1753 = vmul.f32 %v1733, %v1733
          %v1754 = vrot.slane %v1752, 4
          %v1755 = vadd.f32 %v1752, %v1754
          %v1756 = vrot.slane %v1755, 2
          %v1757 = vadd.f32 %v1755, %v1756
          %v1758 = vrot.slane %v1757, 1
          %v1759 = vadd.f32 %v1757, %v1758
          %v1760 = vrot.slane %v1753, 4
          %v1761 = vadd.f32 %v1753, %v1760
          %v1762 = vrot.slane %v1761, 2
          %v1763 = vadd.f32 %v1761, %v1762
          %v1764 = vrot.slane %v1763, 1
          %v1765 = vadd.f32 %v1763, %v1764
          %v1766 = vmul.f32 %v1759, 0.125
          %v1767 = vmul.f32 %v1765, 0.125
          %v1768 = vmul.f32 %v1750, %v1750
          %v1769 = vmul.f32 %v1751, %v1751
          %v1770 = vsub.f32 %v1766, %v1768
          %v1771 = vsub.f32 %v1767, %v1769
          %v1772 = vmax.f32 %v1770, 0.0
          %v1773 = vmax.f32 %v1771, 0.0
          %v1774 = vsub.f32 %v1707, %v1750
          %v1775 = vsub.f32 %v1733, %v1751
          %v1776 = vadd.f32 %v1772, 1e-05
          %v1777 = vadd.f32 %v1773, 1e-05
          %v1778 = vrsqrt.pop %v1776
          %v1779 = vmul.f32 %v1778, %v1776
          %v1780 = vmul.f32 %v1779, %v1778
          %v1781 = vmul.f32 0.5, %v1780
          %v1782 = vsub.f32 1.5, %v1781
          %v1783 = vmul.f32 %v1778, %v1782
          %vm1784 = vweird.f32 %v1776
          %vm1785 = vweird.f32 %v1778
          %vm1786 = vmor %vm1784, %vm1785
          %v1787 = vsel %vm1786, %v1778, %v1783
          %v1788 = vrsqrt.pop %v1777
          %v1789 = vmul.f32 %v1788, %v1777
          %v1790 = vmul.f32 %v1789, %v1788
          %v1791 = vmul.f32 0.5, %v1790
          %v1792 = vsub.f32 1.5, %v1791
          %v1793 = vmul.f32 %v1788, %v1792
          %vm1794 = vweird.f32 %v1777
          %vm1795 = vweird.f32 %v1788
          %vm1796 = vmor %vm1794, %vm1795
          %v1797 = vsel %vm1796, %v1788, %v1793
          %v1798 = vmul.f32 %v1774, %v1787
          %v1799 = vmul.f32 %v1775, %v1797
          %v1801 = vperm.slane %v1736, 0
          %v1802 = vperm.slane %v1736, 1
          %v1805 = vmul.f32 %v1798, %v1801
          %v1806 = vmul.f32 %v1799, %v1802
          %v1808 = vperm.slane %v1737, 0
          %v1809 = vperm.slane %v1737, 1
          %v1812 = vadd.f32 %v1805, %v1808
          %v1813 = vadd.f32 %v1806, %v1809
          %v1814 = vmax.f32 %v1812, 0.0
          %v1815 = vmax.f32 %v1813, 0.0
          %v1816 = vpack.c.bf16 %v1814, %v1814
          %v1817 = vpack.c.bf16 %v1815, %v1815
          %v1818 = vld [vmem:[#allocation12] sm:$0xff]
          %v1819 = vld [vmem:[#allocation12 + $0x8] sm:$0xff]
          %v1820 = vld [vmem:[#allocation12 + $0x10] sm:$0xff]
          %v1821 = vld [vmem:[#allocation12 + $0x18] sm:$0xff]
          %v1822 = vld [vmem:[#allocation12 + $0x20] sm:$0xff]
          %v1823 = vld [vmem:[#allocation12 + $0x28] sm:$0xff]
          %v1824 = vld [vmem:[#allocation12 + $0x30] sm:$0xff]
          %v1825 = vld [vmem:[#allocation12 + $0x38] sm:$0xff]
          %v1826 = vld [vmem:[#allocation12 + $0x40] sm:$0xff]
          %v1827 = vld [vmem:[#allocation12 + $0x48] sm:$0xff]
          %v1828 = vld [vmem:[#allocation12 + $0x50] sm:$0xff]
          %v1829 = vld [vmem:[#allocation12 + $0x58] sm:$0xff]
          %v1830 = vld [vmem:[#allocation12 + $0x60] sm:$0xff]
          %v1831 = vld [vmem:[#allocation12 + $0x68] sm:$0xff]
          %v1832 = vld [vmem:[#allocation12 + $0x70] sm:$0xff]
          %v1833 = vld [vmem:[#allocation12 + $0x78] sm:$0xff]
          %v1834 = vld [vmem:[#allocation12 + $0x80] sm:$0xff]
          %v1835 = vld [vmem:[#allocation12 + $0x88] sm:$0xff]
          %v1836 = vld [vmem:[#allocation12 + $0x90] sm:$0xff]
          %v1837 = vld [vmem:[#allocation12 + $0x98] sm:$0xff]
          %v1838 = vld [vmem:[#allocation12 + $0xa0] sm:$0xff]
          %v1839 = vld [vmem:[#allocation12 + $0xa8] sm:$0xff]
          %v1840 = vld [vmem:[#allocation12 + $0xb0] sm:$0xff]
          %v1841 = vld [vmem:[#allocation12 + $0xb8] sm:$0xff]
          %v1842 = vld [vmem:[#allocation12 + $0xc0] sm:$0xff]
          %v1843 = vld [vmem:[#allocation12 + $0xc8] sm:$0xff]
          %v1844 = vld [vmem:[#allocation12 + $0xd0] sm:$0xff]
          %v1845 = vld [vmem:[#allocation12 + $0xd8] sm:$0xff]
          %v1846 = vld [vmem:[#allocation12 + $0xe0] sm:$0xff]
          %v1847 = vld [vmem:[#allocation12 + $0xe8] sm:$0xff]
          %v1848 = vld [vmem:[#allocation12 + $0xf0] sm:$0xff]
          %v1849 = vld [vmem:[#allocation12 + $0xf8] sm:$0xff]
          %v1882 = vunpack.c.l.b16 %v1818
          %v1883 = vunpack.c.h.b16 %v1818
          %v1884 = vunpack.c.l.b16 %v1819
          %v1885 = vunpack.c.h.b16 %v1819
          %v1886 = vunpack.c.l.b16 %v1820
          %v1887 = vunpack.c.h.b16 %v1820
          %v1888 = vunpack.c.l.b16 %v1821
          %v1889 = vunpack.c.h.b16 %v1821
          %v1890 = vunpack.c.l.b16 %v1822
          %v1891 = vunpack.c.h.b16 %v1822
          %v1892 = vunpack.c.l.b16 %v1823
          %v1893 = vunpack.c.h.b16 %v1823
          %v1894 = vunpack.c.l.b16 %v1824
          %v1895 = vunpack.c.h.b16 %v1824
          %v1896 = vunpack.c.l.b16 %v1825
          %v1897 = vunpack.c.h.b16 %v1825
          %v1898 = vunpack.c.l.b16 %v1826
          %v1899 = vunpack.c.h.b16 %v1826
          %v1900 = vunpack.c.l.b16 %v1827
          %v1901 = vunpack.c.h.b16 %v1827
          %v1902 = vunpack.c.l.b16 %v1828
          %v1903 = vunpack.c.h.b16 %v1828
          %v1904 = vunpack.c.l.b16 %v1829
          %v1905 = vunpack.c.h.b16 %v1829
          %v1906 = vunpack.c.l.b16 %v1830
          %v1907 = vunpack.c.h.b16 %v1830
          %v1908 = vunpack.c.l.b16 %v1831
          %v1909 = vunpack.c.h.b16 %v1831
          %v1910 = vunpack.c.l.b16 %v1832
          %v1911 = vunpack.c.h.b16 %v1832
          %v1912 = vunpack.c.l.b16 %v1833
          %v1913 = vunpack.c.h.b16 %v1833
          %v1914 = vunpack.c.l.b16 %v1834
          %v1915 = vunpack.c.h.b16 %v1834
          %v1916 = vunpack.c.l.b16 %v1835
          %v1917 = vunpack.c.h.b16 %v1835
          %v1918 = vunpack.c.l.b16 %v1836
          %v1919 = vunpack.c.h.b16 %v1836
          %v1920 = vunpack.c.l.b16 %v1837
          %v1921 = vunpack.c.h.b16 %v1837
          %v1922 = vunpack.c.l.b16 %v1838
          %v1923 = vunpack.c.h.b16 %v1838
          %v1924 = vunpack.c.l.b16 %v1839
          %v1925 = vunpack.c.h.b16 %v1839
          %v1926 = vunpack.c.l.b16 %v1840
          %v1927 = vunpack.c.h.b16 %v1840
          %v1928 = vunpack.c.l.b16 %v1841
          %v1929 = vunpack.c.h.b16 %v1841
          %v1930 = vunpack.c.l.b16 %v1842
          %v1931 = vunpack.c.h.b16 %v1842
          %v1932 = vunpack.c.l.b16 %v1843
          %v1933 = vunpack.c.h.b16 %v1843
          %v1934 = vunpack.c.l.b16 %v1844
          %v1935 = vunpack.c.h.b16 %v1844
          %v1936 = vunpack.c.l.b16 %v1845
          %v1937 = vunpack.c.h.b16 %v1845
          %v1938 = vunpack.c.l.b16 %v1846
          %v1939 = vunpack.c.h.b16 %v1846
          %v1940 = vunpack.c.l.b16 %v1847
          %v1941 = vunpack.c.h.b16 %v1847
          %v1942 = vunpack.c.l.b16 %v1848
          %v1943 = vunpack.c.h.b16 %v1848
          %v1944 = vunpack.c.l.b16 %v1849
          %v1945 = vunpack.c.h.b16 %v1849
          %v1946 = vpack.c.b16 %v1884, %v1882
          %v1947 = vpack.c.b16 %v1885, %v1883
          %v1948 = vpack.c.b16 %v1888, %v1886
          %v1949 = vpack.c.b16 %v1889, %v1887
          %v1950 = vpack.c.b16 %v1892, %v1890
          %v1951 = vpack.c.b16 %v1893, %v1891
          %v1952 = vpack.c.b16 %v1896, %v1894
          %v1953 = vpack.c.b16 %v1897, %v1895
          %v1954 = vpack.c.b16 %v1900, %v1898
          %v1955 = vpack.c.b16 %v1901, %v1899
          %v1956 = vpack.c.b16 %v1904, %v1902
          %v1957 = vpack.c.b16 %v1905, %v1903
          %v1958 = vpack.c.b16 %v1908, %v1906
          %v1959 = vpack.c.b16 %v1909, %v1907
          %v1960 = vpack.c.b16 %v1912, %v1910
          %v1961 = vpack.c.b16 %v1913, %v1911
          %v1962 = vpack.c.b16 %v1916, %v1914
          %v1963 = vpack.c.b16 %v1917, %v1915
          %v1964 = vpack.c.b16 %v1920, %v1918
          %v1965 = vpack.c.b16 %v1921, %v1919
          %v1966 = vpack.c.b16 %v1924, %v1922
          %v1967 = vpack.c.b16 %v1925, %v1923
          %v1968 = vpack.c.b16 %v1928, %v1926
          %v1969 = vpack.c.b16 %v1929, %v1927
          %v1970 = vpack.c.b16 %v1932, %v1930
          %v1971 = vpack.c.b16 %v1933, %v1931
          %v1972 = vpack.c.b16 %v1936, %v1934
          %v1973 = vpack.c.b16 %v1937, %v1935
          %v1974 = vpack.c.b16 %v1940, %v1938
          %v1975 = vpack.c.b16 %v1941, %v1939
          %v1976 = vpack.c.b16 %v1944, %v1942
          %v1977 = vpack.c.b16 %v1945, %v1943
          %2010 = vmatpush.bf16.msra.mxu0 %v1960
          %2011 = vmatpush.bf16.msra.mxu0 %v1958
          %2012 = vmatpush.bf16.msra.mxu0 %v1956
          %2013 = vmatpush.bf16.msra.mxu0 %v1954
          %2014 = vmatpush.bf16.msra.mxu0 %v1952
          %2015 = vmatpush.bf16.msra.mxu0 %v1950
          %2016 = vmatpush.bf16.msra.mxu0 %v1948
          %2017 = vmatpush.bf16.msra.mxu0 %v1946
          %2018 = vmatmul.bf16.gmra.mxu0 %v1816
          %v2019 = vpop.f32.mrf.mxu0
          %v2020 = vadd.f32 0.0, %v2019
          %v2021 = vpop.f32.mrf.mxu0
          %2022 = vdwg.mxu0
          %2023 = vmatpush.bf16.msra.mxu0 %v1976
          %2024 = vmatpush.bf16.msra.mxu0 %v1974
          %2025 = vmatpush.bf16.msra.mxu0 %v1972
          %2026 = vmatpush.bf16.msra.mxu0 %v1970
          %2027 = vmatpush.bf16.msra.mxu0 %v1968
          %2028 = vmatpush.bf16.msra.mxu0 %v1966
          %2029 = vmatpush.bf16.msra.mxu0 %v1964
          %2030 = vmatpush.bf16.msra.mxu0 %v1962
          %2031 = vmatmul.bf16.gmra.mxu0 %v1817
          %v2032 = vpop.f32.mrf.mxu0
          %v2033 = vadd.f32 %v2020, %v2032
          %v2034 = vpop.f32.mrf.mxu0
          %2035 = vdwg.mxu0
          %2036 = vmatpush.bf16.msra.mxu0 %v1961
          %2037 = vmatpush.bf16.msra.mxu0 %v1959
          %2038 = vmatpush.bf16.msra.mxu0 %v1957
          %2039 = vmatpush.bf16.msra.mxu0 %v1955
          %2040 = vmatpush.bf16.msra.mxu0 %v1953
          %2041 = vmatpush.bf16.msra.mxu0 %v1951
          %2042 = vmatpush.bf16.msra.mxu0 %v1949
          %2043 = vmatpush.bf16.msra.mxu0 %v1947
          %2044 = vmatmul.bf16.gmra.mxu0 %v1816
          %v2045 = vpop.f32.mrf.mxu0
          %v2046 = vadd.f32 0.0, %v2045
          %v2047 = vpop.f32.mrf.mxu0
          %2048 = vdwg.mxu0
          %2049 = vmatpush.bf16.msra.mxu0 %v1977
          %2050 = vmatpush.bf16.msra.mxu0 %v1975
          %2051 = vmatpush.bf16.msra.mxu0 %v1973
          %2052 = vmatpush.bf16.msra.mxu0 %v1971
          %2053 = vmatpush.bf16.msra.mxu0 %v1969
          %2054 = vmatpush.bf16.msra.mxu0 %v1967
          %2055 = vmatpush.bf16.msra.mxu0 %v1965
          %2056 = vmatpush.bf16.msra.mxu0 %v1963
          %2057 = vmatmul.bf16.gmra.mxu0 %v1817
          %v2058 = vpop.f32.mrf.mxu0
          %v2059 = vadd.f32 %v2046, %v2058
          %v2060 = vpop.f32.mrf.mxu0
          %2061 = vdwg.mxu0
          %v2062 = vrot.slane %v2033, 4
          %v2063 = vadd.f32 %v2033, %v2062
          %v2064 = vrot.slane %v2063, 2
          %v2065 = vadd.f32 %v2063, %v2064
          %v2066 = vrot.slane %v2065, 1
          %v2067 = vadd.f32 %v2065, %v2066
          %v2068 = vrot.slane %v2059, 4
          %v2069 = vadd.f32 %v2059, %v2068
          %v2070 = vrot.slane %v2069, 2
          %v2071 = vadd.f32 %v2069, %v2070
          %v2072 = vrot.slane %v2071, 1
          %v2073 = vadd.f32 %v2071, %v2072
          %v2074 = vmul.f32 %v2067, 0.125
          %v2075 = vmul.f32 %v2073, 0.125
          %v2076 = vmul.f32 %v2033, %v2033
          %v2077 = vmul.f32 %v2059, %v2059
          %v2078 = vrot.slane %v2076, 4
          %v2079 = vadd.f32 %v2076, %v2078
          %v2080 = vrot.slane %v2079, 2
          %v2081 = vadd.f32 %v2079, %v2080
          %v2082 = vrot.slane %v2081, 1
          %v2083 = vadd.f32 %v2081, %v2082
          %v2084 = vrot.slane %v2077, 4
          %v2085 = vadd.f32 %v2077, %v2084
          %v2086 = vrot.slane %v2085, 2
          %v2087 = vadd.f32 %v2085, %v2086
          %v2088 = vrot.slane %v2087, 1
          %v2089 = vadd.f32 %v2087, %v2088
          %v2090 = vmul.f32 %v2083, 0.125
          %v2091 = vmul.f32 %v2089, 0.125
          %v2092 = vmul.f32 %v2074, %v2074
          %v2093 = vmul.f32 %v2075, %v2075
          %v2094 = vsub.f32 %v2090, %v2092
          %v2095 = vsub.f32 %v2091, %v2093
          %v2096 = vmax.f32 %v2094, 0.0
          %v2097 = vmax.f32 %v2095, 0.0
          %v2098 = vsub.f32 %v2033, %v2074
          %v2099 = vsub.f32 %v2059, %v2075
          %v2100 = vadd.f32 %v2096, 1e-05
          %v2101 = vadd.f32 %v2097, 1e-05
          %v2102 = vrsqrt.pop %v2100
          %v2103 = vmul.f32 %v2102, %v2100
          %v2104 = vmul.f32 %v2103, %v2102
          %v2105 = vmul.f32 0.5, %v2104
          %v2106 = vsub.f32 1.5, %v2105
          %v2107 = vmul.f32 %v2102, %v2106
          %vm2108 = vweird.f32 %v2100
          %vm2109 = vweird.f32 %v2102
          %vm2110 = vmor %vm2108, %vm2109
          %v2111 = vsel %vm2110, %v2102, %v2107
          %v2112 = vrsqrt.pop %v2101
          %v2113 = vmul.f32 %v2112, %v2101
          %v2114 = vmul.f32 %v2113, %v2112
          %v2115 = vmul.f32 0.5, %v2114
          %v2116 = vsub.f32 1.5, %v2115
          %v2117 = vmul.f32 %v2112, %v2116
          %vm2118 = vweird.f32 %v2101
          %vm2119 = vweird.f32 %v2112
          %vm2120 = vmor %vm2118, %vm2119
          %v2121 = vsel %vm2120, %v2112, %v2117
          %v2122 = vmul.f32 %v2098, %v2111
          %v2123 = vmul.f32 %v2099, %v2121
          %v2124 = vpack.c.bf16 %v2122, %v2122
          %v2125 = vpack.c.bf16 %v2123, %v2123
          %v2126 = vld [vmem:[#allocation14] sm:$0xf]
          %v2127 = vld [vmem:[#allocation14 + $0x4] sm:$0xf]
          %v2128 = vld [vmem:[#allocation14 + $0x8] sm:$0xf]
          %v2129 = vld [vmem:[#allocation14 + $0xc] sm:$0xf]
          %v2130 = vld [vmem:[#allocation14 + $0x10] sm:$0xf]
          %v2131 = vld [vmem:[#allocation14 + $0x14] sm:$0xf]
          %v2132 = vld [vmem:[#allocation14 + $0x18] sm:$0xf]
          %v2133 = vld [vmem:[#allocation14 + $0x1c] sm:$0xf]
          %v2134 = vld [vmem:[#allocation14 + $0x20] sm:$0xf]
          %v2135 = vld [vmem:[#allocation14 + $0x24] sm:$0xf]
          %v2136 = vld [vmem:[#allocation14 + $0x28] sm:$0xf]
          %v2137 = vld [vmem:[#allocation14 + $0x2c] sm:$0xf]
          %v2138 = vld [vmem:[#allocation14 + $0x30] sm:$0xf]
          %v2139 = vld [vmem:[#allocation14 + $0x34] sm:$0xf]
          %v2140 = vld [vmem:[#allocation14 + $0x38] sm:$0xf]
          %v2141 = vld [vmem:[#allocation14 + $0x3c] sm:$0xf]
          %v2142 = vld [vmem:[#allocation14 + $0x40] sm:$0xf]
          %v2143 = vld [vmem:[#allocation14 + $0x44] sm:$0xf]
          %v2144 = vld [vmem:[#allocation14 + $0x48] sm:$0xf]
          %v2145 = vld [vmem:[#allocation14 + $0x4c] sm:$0xf]
          %v2146 = vld [vmem:[#allocation14 + $0x50] sm:$0xf]
          %v2147 = vld [vmem:[#allocation14 + $0x54] sm:$0xf]
          %v2148 = vld [vmem:[#allocation14 + $0x58] sm:$0xf]
          %v2149 = vld [vmem:[#allocation14 + $0x5c] sm:$0xf]
          %v2150 = vld [vmem:[#allocation14 + $0x60] sm:$0xf]
          %v2151 = vld [vmem:[#allocation14 + $0x64] sm:$0xf]
          %v2152 = vld [vmem:[#allocation14 + $0x68] sm:$0xf]
          %v2153 = vld [vmem:[#allocation14 + $0x6c] sm:$0xf]
          %v2154 = vld [vmem:[#allocation14 + $0x70] sm:$0xf]
          %v2155 = vld [vmem:[#allocation14 + $0x74] sm:$0xf]
          %v2156 = vld [vmem:[#allocation14 + $0x78] sm:$0xf]
          %v2157 = vld [vmem:[#allocation14 + $0x7c] sm:$0xf]
          %v2190 = vunpack.c.l.b16 %v2126
          %v2191 = vunpack.c.l.b16 %v2127
          %v2192 = vunpack.c.l.b16 %v2128
          %v2193 = vunpack.c.l.b16 %v2129
          %v2194 = vunpack.c.l.b16 %v2130
          %v2195 = vunpack.c.l.b16 %v2131
          %v2196 = vunpack.c.l.b16 %v2132
          %v2197 = vunpack.c.l.b16 %v2133
          %v2198 = vunpack.c.l.b16 %v2134
          %v2199 = vunpack.c.l.b16 %v2135
          %v2200 = vunpack.c.l.b16 %v2136
          %v2201 = vunpack.c.l.b16 %v2137
          %v2202 = vunpack.c.l.b16 %v2138
          %v2203 = vunpack.c.l.b16 %v2139
          %v2204 = vunpack.c.l.b16 %v2140
          %v2205 = vunpack.c.l.b16 %v2141
          %v2206 = vunpack.c.l.b16 %v2142
          %v2207 = vunpack.c.l.b16 %v2143
          %v2208 = vunpack.c.l.b16 %v2144
          %v2209 = vunpack.c.l.b16 %v2145
          %v2210 = vunpack.c.l.b16 %v2146
          %v2211 = vunpack.c.l.b16 %v2147
          %v2212 = vunpack.c.l.b16 %v2148
          %v2213 = vunpack.c.l.b16 %v2149
          %v2214 = vunpack.c.l.b16 %v2150
          %v2215 = vunpack.c.l.b16 %v2151
          %v2216 = vunpack.c.l.b16 %v2152
          %v2217 = vunpack.c.l.b16 %v2153
          %v2218 = vunpack.c.l.b16 %v2154
          %v2219 = vunpack.c.l.b16 %v2155
          %v2220 = vunpack.c.l.b16 %v2156
          %v2221 = vunpack.c.l.b16 %v2157
          %v2222 = vpack.c.b16 %v2191, %v2190
          %v2223 = vpack.c.b16 %v2193, %v2192
          %v2224 = vpack.c.b16 %v2195, %v2194
          %v2225 = vpack.c.b16 %v2197, %v2196
          %v2226 = vpack.c.b16 %v2199, %v2198
          %v2227 = vpack.c.b16 %v2201, %v2200
          %v2228 = vpack.c.b16 %v2203, %v2202
          %v2229 = vpack.c.b16 %v2205, %v2204
          %v2230 = vpack.c.b16 %v2207, %v2206
          %v2231 = vpack.c.b16 %v2209, %v2208
          %v2232 = vpack.c.b16 %v2211, %v2210
          %v2233 = vpack.c.b16 %v2213, %v2212
          %v2234 = vpack.c.b16 %v2215, %v2214
          %v2235 = vpack.c.b16 %v2217, %v2216
          %v2236 = vpack.c.b16 %v2219, %v2218
          %v2237 = vpack.c.b16 %v2221, %v2220
          %2254 = vmatpush.bf16.msra.mxu0 %v2229
          %2255 = vmatpush.bf16.msra.mxu0 %v2228
          %2256 = vmatpush.bf16.msra.mxu0 %v2227
          %2257 = vmatpush.bf16.msra.mxu0 %v2226
          %2258 = vmatpush.bf16.msra.mxu0 %v2225
          %2259 = vmatpush.bf16.msra.mxu0 %v2224
          %2260 = vmatpush.bf16.msra.mxu0 %v2223
          %2261 = vmatpush.bf16.msra.mxu0 %v2222
          %2262 = vmatmul.bf16.gmra.mxu0 %v2124
          %v2263 = vpop.f32.mrf.mxu0
          %v2264 = vadd.f32 0.0, %v2263
          %v2265 = vpop.f32.mrf.mxu0
          %2266 = vdwg.mxu0
          %2267 = vmatpush.bf16.msra.mxu0 %v2237
          %2268 = vmatpush.bf16.msra.mxu0 %v2236
          %2269 = vmatpush.bf16.msra.mxu0 %v2235
          %2270 = vmatpush.bf16.msra.mxu0 %v2234
          %2271 = vmatpush.bf16.msra.mxu0 %v2233
          %2272 = vmatpush.bf16.msra.mxu0 %v2232
          %2273 = vmatpush.bf16.msra.mxu0 %v2231
          %2274 = vmatpush.bf16.msra.mxu0 %v2230
          %2275 = vmatmul.bf16.gmra.mxu0 %v2125
          %v2276 = vpop.f32.mrf.mxu0
          %v2277 = vadd.f32 %v2264, %v2276
          %v2278 = vpop.f32.mrf.mxu0
          %2279 = vdwg.mxu0
          %v2280 = vld [vmem:[%s10] sm:$0x1]
          %v2281 = vld [vmem:[%s11] sm:$0x1]
          %v2282 = vrot.slane %v2277, 4
          %v2283 = vadd.f32 %v2277, %v2282
          %v2284 = vrot.slane %v2283, 2
          %v2285 = vadd.f32 %v2283, %v2284
          %v2286 = vrot.slane %v2285, 1
          %v2287 = vadd.f32 %v2285, %v2286
          %v2288 = vmul.f32 %v2287, 0.125
          %v2289 = vmul.f32 %v2277, %v2277
          %v2290 = vrot.slane %v2289, 4
          %v2291 = vadd.f32 %v2289, %v2290
          %v2292 = vrot.slane %v2291, 2
          %v2293 = vadd.f32 %v2291, %v2292
          %v2294 = vrot.slane %v2293, 1
          %v2295 = vadd.f32 %v2293, %v2294
          %v2296 = vmul.f32 %v2295, 0.125
          %v2297 = vmul.f32 %v2288, %v2288
          %v2298 = vsub.f32 %v2296, %v2297
          %v2299 = vmax.f32 %v2298, 0.0
          %v2300 = vsub.f32 %v2277, %v2288
          %v2301 = vadd.f32 %v2299, 1e-05
          %v2302 = vrsqrt.pop %v2301
          %v2303 = vmul.f32 %v2302, %v2301
          %v2304 = vmul.f32 %v2303, %v2302
          %v2305 = vmul.f32 0.5, %v2304
          %v2306 = vsub.f32 1.5, %v2305
          %v2307 = vmul.f32 %v2302, %v2306
          %vm2308 = vweird.f32 %v2301
          %vm2309 = vweird.f32 %v2302
          %vm2310 = vmor %vm2308, %vm2309
          %v2311 = vsel %vm2310, %v2302, %v2307
          %v2312 = vmul.f32 %v2300, %v2311
          %v2314 = vperm.slane %v2280, 0
          %v2316 = vmul.f32 %v2312, %v2314
          %v2318 = vperm.slane %v2281, 0
          %v2320 = vadd.f32 %v2316, %v2318
          %v2321 = vmax.f32 %v2320, 0.0
          %v2322 = vpack.c.bf16 %v2321, %v2321
          %v2323 = vld [vmem:[#allocation15] sm:$0xff]
          %v2324 = vld [vmem:[#allocation15 + $0x8] sm:$0xff]
          %v2325 = vld [vmem:[#allocation15 + $0x10] sm:$0xff]
          %v2326 = vld [vmem:[#allocation15 + $0x18] sm:$0xff]
          %v2327 = vld [vmem:[#allocation15 + $0x20] sm:$0xff]
          %v2328 = vld [vmem:[#allocation15 + $0x28] sm:$0xff]
          %v2329 = vld [vmem:[#allocation15 + $0x30] sm:$0xff]
          %v2330 = vld [vmem:[#allocation15 + $0x38] sm:$0xff]
          %v2331 = vld [vmem:[#allocation15 + $0x40] sm:$0xff]
          %v2332 = vld [vmem:[#allocation15 + $0x48] sm:$0xff]
          %v2333 = vld [vmem:[#allocation15 + $0x50] sm:$0xff]
          %v2334 = vld [vmem:[#allocation15 + $0x58] sm:$0xff]
          %v2335 = vld [vmem:[#allocation15 + $0x60] sm:$0xff]
          %v2336 = vld [vmem:[#allocation15 + $0x68] sm:$0xff]
          %v2337 = vld [vmem:[#allocation15 + $0x70] sm:$0xff]
          %v2338 = vld [vmem:[#allocation15 + $0x78] sm:$0xff]
          %v2339 = vld [vmem:[%s13] sm:$0x3]
          %v2341 = vperm.slane %v2339, 0
          %v2342 = vperm.slane %v2339, 1
          %v2361 = vunpack.c.l.b16 %v2323
          %v2362 = vunpack.c.h.b16 %v2323
          %v2363 = vunpack.c.l.b16 %v2324
          %v2364 = vunpack.c.h.b16 %v2324
          %v2365 = vunpack.c.l.b16 %v2325
          %v2366 = vunpack.c.h.b16 %v2325
          %v2367 = vunpack.c.l.b16 %v2326
          %v2368 = vunpack.c.h.b16 %v2326
          %v2369 = vunpack.c.l.b16 %v2327
          %v2370 = vunpack.c.h.b16 %v2327
          %v2371 = vunpack.c.l.b16 %v2328
          %v2372 = vunpack.c.h.b16 %v2328
          %v2373 = vunpack.c.l.b16 %v2329
          %v2374 = vunpack.c.h.b16 %v2329
          %v2375 = vunpack.c.l.b16 %v2330
          %v2376 = vunpack.c.h.b16 %v2330
          %v2377 = vunpack.c.l.b16 %v2331
          %v2378 = vunpack.c.h.b16 %v2331
          %v2379 = vunpack.c.l.b16 %v2332
          %v2380 = vunpack.c.h.b16 %v2332
          %v2381 = vunpack.c.l.b16 %v2333
          %v2382 = vunpack.c.h.b16 %v2333
          %v2383 = vunpack.c.l.b16 %v2334
          %v2384 = vunpack.c.h.b16 %v2334
          %v2385 = vunpack.c.l.b16 %v2335
          %v2386 = vunpack.c.h.b16 %v2335
          %v2387 = vunpack.c.l.b16 %v2336
          %v2388 = vunpack.c.h.b16 %v2336
          %v2389 = vunpack.c.l.b16 %v2337
          %v2390 = vunpack.c.h.b16 %v2337
          %v2391 = vunpack.c.l.b16 %v2338
          %v2392 = vunpack.c.h.b16 %v2338
          %v2393 = vpack.c.b16 %v2363, %v2361
          %v2394 = vpack.c.b16 %v2364, %v2362
          %v2395 = vpack.c.b16 %v2367, %v2365
          %v2396 = vpack.c.b16 %v2368, %v2366
          %v2397 = vpack.c.b16 %v2371, %v2369
          %v2398 = vpack.c.b16 %v2372, %v2370
          %v2399 = vpack.c.b16 %v2375, %v2373
          %v2400 = vpack.c.b16 %v2376, %v2374
          %v2401 = vpack.c.b16 %v2379, %v2377
          %v2402 = vpack.c.b16 %v2380, %v2378
          %v2403 = vpack.c.b16 %v2383, %v2381
          %v2404 = vpack.c.b16 %v2384, %v2382
          %v2405 = vpack.c.b16 %v2387, %v2385
          %v2406 = vpack.c.b16 %v2388, %v2386
          %v2407 = vpack.c.b16 %v2391, %v2389
          %v2408 = vpack.c.b16 %v2392, %v2390
          %2425 = vmatpush.bf16.msra.mxu0 %v2407
          %2426 = vmatpush.bf16.msra.mxu0 %v2405
          %2427 = vmatpush.bf16.msra.mxu0 %v2403
          %2428 = vmatpush.bf16.msra.mxu0 %v2401
          %2429 = vmatpush.bf16.msra.mxu0 %v2399
          %2430 = vmatpush.bf16.msra.mxu0 %v2397
          %2431 = vmatpush.bf16.msra.mxu0 %v2395
          %2432 = vmatpush.bf16.msra.mxu0 %v2393
          %2433 = vmatmul.bf16.gmra.mxu0 %v2322
          %v2434 = vpop.f32.mrf.mxu0
          %v2435 = vadd.f32 %v2341, %v2434
          %v2436 = vpop.f32.mrf.mxu0
          %2437 = vdwg.mxu0
          %2438 = vmatpush.bf16.msra.mxu0 %v2408
          %2439 = vmatpush.bf16.msra.mxu0 %v2406
          %2440 = vmatpush.bf16.msra.mxu0 %v2404
          %2441 = vmatpush.bf16.msra.mxu0 %v2402
          %2442 = vmatpush.bf16.msra.mxu0 %v2400
          %2443 = vmatpush.bf16.msra.mxu0 %v2398
          %2444 = vmatpush.bf16.msra.mxu0 %v2396
          %2445 = vmatpush.bf16.msra.mxu0 %v2394
          %2446 = vmatmul.bf16.gmra.mxu0 %v2322
          %v2447 = vpop.f32.mrf.mxu0
          %v2448 = vadd.f32 %v2342, %v2447
          %v2449 = vpop.f32.mrf.mxu0
          %2450 = vdwg.mxu0
          %2451 = vst [vmem:[#allocation17] sm:$0xff] %v2122
          %2452 = vst [vmem:[#allocation17 + $0x8] sm:$0xff] %v2123
          %2453 = vst [vmem:[#allocation18] sm:$0xff] %v2435
          %2454 = vst [vmem:[#allocation18 + $0x8] sm:$0xff] %v2448
        $region116: #{tpu_custom_call.1} parent=75 // pred_fallthru
          _
        // Predicated region
        $region117: #{tpu_custom_call.1} parent=75 // pred_check
          %p2455 = pneg %p355
        $region118: #{tpu_custom_call.1} parent=75 // pred_check_branch
          %2457 = sbr.rel (%p2455) target = $region120
        $region119: #{tpu_custom_call.1} parent=75 // pred_region
          %2459 = vsyncadd [#allocation5], 0
          %s2461 = sshll.u32 [#allocation17], 4
          %s2462 = int_to_ptr.vmem [resolvable:$true] %s2461
          %s2463 = sshll.u32 %s14, 4
          %s2464 = int_to_ptr.hbm [resolvable:$true] %s2463
          %2466 = dma.vmem_to_hbm [thread:$0]  %s2462, 256, %s2464, [#allocation5]
        $region120: #{tpu_custom_call.1} parent=75 // pred_fallthru
          _
        // Predicated region
        $region121: #{tpu_custom_call.1} parent=75 // pred_check
          %p2467 = pneg %p376
        $region122: #{tpu_custom_call.1} parent=75 // pred_check_branch
          %2469 = sbr.rel (%p2467) target = $region124
        $region123: #{tpu_custom_call.1} parent=75 // pred_region
          %2471 = vsyncadd [#allocation19], 0
          %s2473 = sshll.u32 [#allocation18], 4
          %s2474 = int_to_ptr.vmem [resolvable:$true] %s2473
          %s2475 = sshll.u32 %s15, 4
          %s2476 = int_to_ptr.hbm [resolvable:$true] %s2475
          %2478 = dma.vmem_to_hbm [thread:$0]  %s2474, 256, %s2476, [#allocation19]
        $region124: #{tpu_custom_call.1} parent=75 // pred_fallthru
          _
        // Predicated region
        $region125: #{tpu_custom_call.1} parent=75 // pred_check
          %p2479 = pneg %p355
        $region126: #{tpu_custom_call.1} parent=75 // pred_check_branch
          %2481 = sbr.rel (%p2479) target = $region128
        $region127: #{tpu_custom_call.1} parent=75 // pred_region
          %2483 = dma.done [#allocation5], 256
        $region128: #{tpu_custom_call.1} parent=75 // pred_fallthru
          _
        // Predicated region
        $region129: #{tpu_custom_call.1} parent=75 // pred_check
          %p2484 = pneg %p376
        $region130: #{tpu_custom_call.1} parent=75 // pred_check_branch
          %2486 = sbr.rel (%p2484) target = $region132
        $region131: #{tpu_custom_call.1} parent=75 // pred_region
          %2488 = dma.done [#allocation19], 256
        $region132: #{tpu_custom_call.1} parent=75 // pred_fallthru
          _
      $region76: #{tpu_custom_call.1} parent=5 // pred_fallthru
        _
      %p2489 = scmp.le.s32.totalorder 2, %s33
      // Predicated region
      $region133: #{tpu_custom_call.1} parent=5 // pred_check
        %p2490 = pneg %p2489
      $region134: #{tpu_custom_call.1} parent=5 // pred_check_branch
        %2492 = sbr.rel (%p2490) target = $region136
      $region135: #{tpu_custom_call.1} parent=5 // pred_region
        %s2493 = ssub.s32 %s33, 2
      $region136: #{tpu_custom_call.1} parent=5 // pred_fallthru
        _
    $region6: #{tpu_custom_call.1} parent=1 // loop_footer
      %s37 = sadd.s32 1, %s33
    $region7: #{tpu_custom_call.1} parent=1 // loop_footer_branch
      %32 = sbr.rel target = $region3
    $region8: #{tpu_custom_call.1} parent=1 // loop_exit
      _
    %2494 = vsyncpa [#allocation4], 1
    %s2495 = scalar_lea.sflag [#allocation4], 1
    %2496 = vsyncpa %s2495, 1
    %2497 = vsyncpa [#allocation7], 1
    %s2498 = scalar_lea.sflag [#allocation7], 1
    %2499 = vsyncpa %s2498, 1
    %2500 = vsyncpa [#allocation10], 1
    %2501 = vsyncpa [#allocation13], 1
    %2502 = vsyncpa [#allocation16], 1
    %2503 = vsyncpa [#allocation5], 1
    %s2504 = scalar_lea.sflag [#allocation5], 1
    %2505 = vsyncpa %s2504, 1
    %2506 = vsyncpa [#allocation19], 1

</llo_original>
